<compile_context>
chip_gen: v7x
topology: tpu7x:2x2x1
jax: 0.10.0
libtpu: 0.0.40
codegen_flags: <defaults>
</compile_context>

<pallas_src>
import jax
import jax.numpy as jnp
from jax.experimental import pallas as pl
from jax.experimental.pallas import tpu as pltpu

_ROW_ALIGN = 16     # sublane multiple, safe for both f32 (8) and bf16 (16) blocks
_LANE_ALIGN = 128   # lane width


def _round_up(x, m):
    return ((x + m - 1) // m) * m


def _pad_axis(x, axis, new_size):
    pad = new_size - x.shape[axis]
    if pad == 0:
        return x
    widths = [(0, 0)] * x.ndim
    widths[axis] = (0, pad)
    return jnp.pad(x, widths)


# ---------------------------------------------------------------------------
# Kernel body (shared by both node types).
# ---------------------------------------------------------------------------
def _mbf_kernel(f1_ref, spat_ref, w2_ref, b2_ref, w3_ref, b3_ref, out_ref):
    """relu(F1 * (spat@W2+b2)) @ W3 + b3 for one tile of rows.

    f1_ref   : (1, Fq, Kp) f32  -- precomputed appearance features (app@W1+b1)
               Fq == Q : row (p, q) of the spatial block pairs with f1[q]
               Fq == 1 : every row pairs with f1[0]
    spat_ref : (P, Q, S)        -- spatial rows (flattened P-major)
    out_ref  : (P, Q, R) or (P*Q, R)
    """
    p_blk, q_blk, s_size = spat_ref.shape
    k_pad = w2_ref.shape[1]
    rows = p_blk * q_blk

    spat = spat_ref[...].reshape(rows, s_size)
    f2 = jnp.dot(spat, w2_ref[...], preferred_element_type=jnp.float32)
    f2 = f2 + b2_ref[...]                                    # (rows, Kp)  f32
    f1 = f1_ref[0]                                           # (Fq, Kp)    f32

    # Appearance broadcast is fused into the multiply (no rows x Kp temporary).
    if f1.shape[0] == 1:
        h = f1 * f2
    else:
        h = (f2.reshape(p_blk, q_blk, k_pad) * f1[None, :, :]).reshape(rows, k_pad)
    h = jnp.maximum(h, 0.0).astype(w3_ref.dtype)

    out = jnp.dot(h, w3_ref[...], preferred_element_type=jnp.float32)
    out = out + b3_ref[...]
    if len(out_ref.shape) == 3:
        out_ref[...] = out.reshape(p_blk, q_blk, out.shape[-1]).astype(out_ref.dtype)
    else:
        out_ref[...] = out.astype(out_ref.dtype)


# ---------------------------------------------------------------------------
# Weight packing: fold the C branches into three wide matrices.
# ---------------------------------------------------------------------------
def _pack_params(params, compute_dtype):
    """W1->(A,K), W2->(S,K), W3->(K,R) with K=C*sub, b3 pre-summed.

    K is zero-padded to 128 lanes.  (Typical K equals the representation size
    and is already a multiple of 256, fully feeding the v6e/v7x 2x256 MXU; we
    deliberately do not force 256-alignment because it would inflate the
    dominant spatial matmul for small K.)  R is NOT padded here -- the object
    path writes it unpadded; the subject path pads it locally for its slab.
    """
    w1, b1, w2, b2, w3, b3 = params
    c, a_size, sub = w1.shape
    s_size = w2.shape[1]
    r_size = w3.shape[2]
    k = c * sub
    k_pad = _round_up(k, _LANE_ALIGN)

    w1p = jnp.transpose(w1, (1, 0, 2)).reshape(a_size, k)    # (A, C*sub)
    w2p = jnp.transpose(w2, (1, 0, 2)).reshape(s_size, k)    # (S, C*sub)
    w3p = w3.reshape(k, r_size)                              # (C*sub, R)
    b1p = b1.reshape(1, k).astype(jnp.float32)
    b2p = b2.reshape(1, k).astype(jnp.float32)
    b3s = jnp.sum(b3, axis=0).reshape(1, r_size).astype(jnp.float32)

    w1p = _pad_axis(w1p, 1, k_pad).astype(compute_dtype)
    w2p = _pad_axis(w2p, 1, k_pad).astype(compute_dtype)
    w3p = _pad_axis(w3p, 0, k_pad).astype(compute_dtype)
    b1p = _pad_axis(b1p, 1, k_pad)
    b2p = _pad_axis(b2p, 1, k_pad)
    return (w1p, b1p, w2p, b2p, w3p, b3s), r_size


def _vmem_limit_bytes(rows_blk, f1_rows, s_size, k_pad, r_cols,
                      compute_dtype, out_dtype):
    ci = jnp.dtype(compute_dtype).itemsize
    oi = jnp.dtype(out_dtype).itemsize
    blocks = (2 * rows_blk * s_size * ci                       # spatial (x2 buf)
              + 2 * f1_rows * k_pad * 4                        # F1      (x2 buf)
              + 2 * rows_blk * r_cols * oi                     # output  (x2 buf)
              + 2 * (s_size * k_pad * ci + k_pad * 4
                     + k_pad * r_cols * ci + r_cols * 4))      # weights (worst)
    interm = rows_blk * k_pad * (8 + ci) + rows_blk * r_cols * 4
    est = (blocks + interm) * 5 // 4 + (2 << 20)
    return int(min(max(est, 48 << 20), 100 << 20))


def _run_pallas(out_shape, grid, data_specs, weight_args, out_spec, vmem_limit,
                data_args):
    def call(single_buffer):
        weight_specs = []
        for w in weight_args:
            idx = lambda *_, nd=w.ndim: (0,) * nd
            if single_buffer:
                # Grid-invariant blocks: one VMEM buffer is enough.
                weight_specs.append(
                    pl.BlockSpec(w.shape, idx, pipeline_mode=pl.Buffered(1)))
            else:
                weight_specs.append(pl.BlockSpec(w.shape, idx))
        return pl.pallas_call(
            _mbf_kernel,
            out_shape=out_shape,
            grid_spec=pltpu.PrefetchScalarGridSpec(
                num_scalar_prefetch=0,
                grid=grid,
                in_specs=list(data_specs) + weight_specs,
                out_specs=out_spec),
            compiler_params=pltpu.CompilerParams(
                dimension_semantics=("parallel",) * len(grid),
                vmem_limit_bytes=vmem_limit),
        )(*data_args, *weight_args)

    try:
        return call(True)
    except Exception:
        # pipeline_mode=pl.Buffered(1) not supported on this jax/libtpu:
        # fall back to default double-buffered weight blocks (same semantics).
        return call(False)


# ---------------------------------------------------------------------------
# node_type='object': output[i, m] pairs spatial[i, m] with appearance[m].
# ---------------------------------------------------------------------------
def _mbf_object(appearance, spatial, packed, r_size, *, target_rows,
                compute_dtype, out_dtype):
    w1p, b1p, w2p, b2p, w3p, b3s = packed
    p_dim, q_dim, s_size = spatial.shape                     # (n_s, n, S)
    k_pad = w1p.shape[1]

    # 2-D tiling: q (appearance axis) tiles are capped at ~target_rows so the
    # rows per grid step never explode for large n; p tiles fill the rest.
    q_tile = _round_up(min(q_dim, target_rows), _ROW_ALIGN)
    q_pad = _round_up(q_dim, q_tile)
    p_tile = max(1, min(p_dim, target_rows // q_tile))
    p_pad = _round_up(p_dim, p_tile)
    # Megacore: make sure there are >= 2 parallel grid steps when possible.
    if (p_pad // p_tile) * (q_pad // q_tile) < 2:
        if p_dim >= 2:
            p_tile = (p_tile + 1) // 2
            p_pad = _round_up(p_dim, p_tile)
        elif q_pad >= 2 * _ROW_ALIGN:
            q_tile = _round_up(q_tile // 2, _ROW_ALIGN)
            q_pad = _round_up(q_dim, q_tile)

    # F1 computed once (plain XLA matmul, f32 accumulation); the kernel only
    # re-reads the (q_tile, Kp) slice it needs at each grid step.
    f1 = jnp.dot(appearance.astype(compute_dtype), w1p,
                 preferred_element_type=jnp.float32) + b1p   # (n, Kp) f32
    f1 = _pad_axis(f1, 0, q_pad)[None]                       # (1, q_pad, Kp)

    spat = _pad_axis(_pad_axis(spatial, 0, p_pad), 1, q_pad).astype(compute_dtype)

    grid = (p_pad // p_tile, q_pad // q_tile)
    vmem_limit = _vmem_limit_bytes(p_tile * q_tile, q_tile, s_size, k_pad,
                                   r_size, compute_dtype, out_dtype)
    data_specs = [
        pl.BlockSpec((1, q_tile, k_pad), lambda i, j: (0, j, 0)),
        pl.BlockSpec((p_tile, q_tile, s_size), lambda i, j: (i, j, 0)),
    ]
    out_spec = pl.BlockSpec((p_tile, q_tile, r_size), lambda i, j: (i, j, 0))
    out = _run_pallas(
        jax.ShapeDtypeStruct((p_pad, q_pad, r_size), out_dtype),
        grid, data_specs, (w2p, b2p, w3p, b3s), out_spec, vmem_limit,
        (f1, spat))
    if p_pad != p_dim or q_pad != q_dim:
        out = out[:p_dim, :q_dim]
    return out


# ---------------------------------------------------------------------------
# node_type='subject': output[m, i] pairs spatial[i, m] with appearance[i].
# The reference permute([1,0,2]) is realized purely through the output
# BlockSpec index_map (block (j, i) of an (n_pad, n_s*Rp) slab).
# ---------------------------------------------------------------------------
def _mbf_subject(appearance, spatial, packed, r_size, *, target_rows,
                 compute_dtype, out_dtype):
    w1p, b1p, w2p, b2p, w3p, b3s = packed
    q_dim, p_dim, s_size = spatial.shape                     # (n_s, n, S)
    k_pad = w1p.shape[1]
    # The slab needs lane-aligned column blocks; with bf16 output the pad
    # costs no more writeback bytes than unpadded f32.
    r_pad = _round_up(r_size, _LANE_ALIGN)
    w3q = _pad_axis(w3p, 1, r_pad)
    b3q = _pad_axis(b3s, 1, r_pad)

    p_tile = _round_up(min(p_dim, target_rows), _ROW_ALIGN)
    p_pad = _round_up(p_dim, p_tile)
    if q_dim * (p_pad // p_tile) < 2 and p_pad >= 2 * _ROW_ALIGN:
        p_tile = _round_up(p_tile // 2, _ROW_ALIGN)
        p_pad = _round_up(p_dim, p_tile)

    f1 = jnp.dot(appearance.astype(compute_dtype), w1p,
                 preferred_element_type=jnp.float32) + b1p   # (n_s, Kp) f32
    f1 = f1[:, None, :]                                      # (n_s, 1, Kp)
    spat = _pad_axis(spatial, 1, p_pad).astype(compute_dtype)   # (n_s, n_pad, S)

    grid = (q_dim, p_pad // p_tile)
    vmem_limit = _vmem_limit_bytes(p_tile, 1, s_size, k_pad, r_pad,
                                   compute_dtype, out_dtype)
    data_specs = [
        pl.BlockSpec((1, 1, k_pad), lambda q, j: (q, 0, 0)),
        pl.BlockSpec((1, p_tile, s_size), lambda q, j: (q, j, 0)),
    ]
    out_spec = pl.BlockSpec((p_tile, r_pad), lambda q, j: (j, q))
    out = _run_pallas(
        jax.ShapeDtypeStruct((p_pad, q_dim * r_pad), out_dtype),
        grid, data_specs, (w2p, b2p, w3q, b3q), out_spec, vmem_limit,
        (f1, spat))
    out = out.reshape(p_pad, q_dim, r_pad)
    if p_pad != p_dim:
        out = out[:p_dim]
    if r_pad != r_size:
        out = out[..., :r_size]
    return out


# ---------------------------------------------------------------------------
# Public wrapper (mirrors MessageMBF.forward).
# ---------------------------------------------------------------------------
def message_mbf(appearance, spatial, params, node_type, *, target_rows=1024,
                compute_dtype=jnp.bfloat16, out_dtype=None):
    """JAX/Pallas equivalent of MessageMBF.forward.

    appearance : (n_s, A) for node_type='subject', (n, A) for 'object'
    spatial    : (n_s, n, S)
    params     : (W1[C,A,sub], b1[C,sub], W2[C,S,sub], b2[C,sub],
                  W3[C,sub,R],  b3[C,R])
    returns    : (n, n_s, R) for 'subject', (n_s, n, R) for 'object'

    compute_dtype : MXU input dtype (bf16 default; accumulation stays f32).
    out_dtype     : HBM output dtype (defaults to compute_dtype, halving the
                    dominant writeback; pass jnp.float32 for full precision).
    """
    if out_dtype is None:
        out_dtype = compute_dtype
    packed, r_size = _pack_params(params, compute_dtype)
    n_s, n, _ = spatial.shape
    if node_type == "subject":
        assert appearance.shape[0] == n_s, "Incorrect size of dim0 for appearance features"
        return _mbf_subject(appearance, spatial, packed, r_size,
                            target_rows=target_rows, compute_dtype=compute_dtype,
                            out_dtype=out_dtype)
    if node_type == "object":
        assert appearance.shape[0] == n, "Incorrect size of dim0 for appearance features"
        return _mbf_object(appearance, spatial, packed, r_size,
                           target_rows=target_rows, compute_dtype=compute_dtype,
                           out_dtype=out_dtype)
    raise ValueError(f'Unknown node type "{node_type}"')


# ---------------------------------------------------------------------------
# Pure-JAX reference (mirrors the PyTorch code path) and parameter init.
# ---------------------------------------------------------------------------
def message_mbf_ref(appearance, spatial, params, node_type):
    w1, b1, w2, b2, w3, b3 = params
    out = None
    for c in range(w1.shape[0]):
        f1 = appearance @ w1[c] + b1[c]                      # (n_s or n, sub)
        f2 = spatial @ w2[c] + b2[c]                         # (n_s, n, sub)
        if node_type == "subject":
            h = jnp.maximum(f1[None, :, :] * jnp.transpose(f2, (1, 0, 2)), 0.0)
        else:
            h = jnp.maximum(f1[None, :, :] * f2, 0.0)
        o = h @ w3[c] + b3[c]
        out = o if out is None else out + o
    return out


def init_params(key, appearance_size, spatial_size, representation_size,
                cardinality):
    sub = representation_size // cardinality
    assert sub * cardinality == representation_size
    ks = jax.random.split(key, 6)
    scale = 0.05
    w1 = scale * jax.random.normal(ks[0], (cardinality, appearance_size, sub), jnp.float32)
    b1 = scale * jax.random.normal(ks[1], (cardinality, sub), jnp.float32)
    w2 = scale * jax.random.normal(ks[2], (cardinality, spatial_size, sub), jnp.float32)
    b2 = scale * jax.random.normal(ks[3], (cardinality, sub), jnp.float32)
    w3 = scale * jax.random.normal(ks[4], (cardinality, sub, representation_size), jnp.float32)
    b3 = scale * jax.random.normal(ks[5], (cardinality, representation_size), jnp.float32)
    return (w1, b1, w2, b2, w3, b3)


if __name__ == "__main__":
    key = jax.random.PRNGKey(0)

    def run_case(n_s, n, a_size, s_size, r_size, card, target_rows,
                 compute_dtype, out_dtype, atol):
        k1, k2, k3, k4 = jax.random.split(jax.random.fold_in(key, n_s * 1000 + n), 4)
        params = init_params(k1, a_size, s_size, r_size, card)
        spatial = jax.random.normal(k2, (n_s, n, s_size), jnp.float32)
        app_s = jax.random.normal(k3, (n_s, a_size), jnp.float32)
        app_o = jax.random.normal(k4, (n, a_size), jnp.float32)

        out_s = jax.block_until_ready(message_mbf(
            app_s, spatial, params, "subject", target_rows=target_rows,
            compute_dtype=compute_dtype, out_dtype=out_dtype))
        out_o = jax.block_until_ready(message_mbf(
            app_o, spatial, params, "object", target_rows=target_rows,
            compute_dtype=compute_dtype, out_dtype=out_dtype))

        ref_s = message_mbf_ref(app_s, spatial, params, "subject")
        ref_o = message_mbf_ref(app_o, spatial, params, "object")

        assert out_s.shape == (n, n_s, r_size), out_s.shape
        assert out_o.shape == (n_s, n, r_size), out_o.shape
        assert jnp.allclose(out_s.astype(jnp.float32), ref_s, atol=atol, rtol=atol), \
            float(jnp.max(jnp.abs(out_s.astype(jnp.float32) - ref_s)))
        assert jnp.allclose(out_o.astype(jnp.float32), ref_o, atol=atol, rtol=atol), \
            float(jnp.max(jnp.abs(out_o.astype(jnp.float32) - ref_o)))

    # Small ragged shapes (padding + megacore grid split), f32 compute/out.
    run_case(n_s=6, n=5, a_size=40, s_size=24, r_size=64, card=2,
             target_rows=1024, compute_dtype=jnp.float32,
             out_dtype=jnp.float32, atol=2e-3)
    # Multiple row tiles along both grid axes, f32 compute/out.
    run_case(n_s=7, n=40, a_size=40, s_size=24, r_size=64, card=2,
             target_rows=32, compute_dtype=jnp.float32,
             out_dtype=jnp.float32, atol=2e-3)
    # R already lane-aligned (128), cardinality 4, f32 compute/out.
    run_case(n_s=9, n=17, a_size=48, s_size=24, r_size=128, card=4,
             target_rows=64, compute_dtype=jnp.float32,
             out_dtype=jnp.float32, atol=2e-3)
    # Default fast path: bf16 MXU inputs + bf16 output, f32 accumulation.
    run_case(n_s=6, n=5, a_size=40, s_size=24, r_size=64, card=2,
             target_rows=1024, compute_dtype=jnp.bfloat16,
             out_dtype=jnp.bfloat16, atol=3e-2)

    print("KERNEL_OK")
</pallas_src>

<mosaic_0001>
module attributes {stable_mosaic.version = 11 : i64} {
  func.func @_mbf_kernel(%arg0: i32, %arg1: i32, %arg2: memref<1x1x128xf32, #tpu.memory_space<vmem>>, %arg3: memref<1x16x24xf32, #tpu.memory_space<vmem>>, %arg4: memref<24x128xf32, #tpu.memory_space<vmem>>, %arg5: memref<1x128xf32, #tpu.memory_space<vmem>>, %arg6: memref<128x128xf32, #tpu.memory_space<vmem>>, %arg7: memref<1x128xf32, #tpu.memory_space<vmem>>, %arg8: memref<16x128xf32, #tpu.memory_space<vmem>>) attributes {dimension_semantics = [#tpu.dimension_semantics<parallel>, #tpu.dimension_semantics<parallel>], iteration_bounds = array<i64: 6, 1>, scalar_prefetch = 0 : i64, scratch_operands = 0 : i64, tpu.core_type = #tpu.core_type<tc>, window_params = [{transform_indices = @transform_0, window_bounds = array<i64: 1, 1, 128>}, {transform_indices = @transform_1, window_bounds = array<i64: 1, 16, 24>}, {pipeline_mode = #tpu.pipeline_mode<synchronous>, transform_indices = @transform_2, window_bounds = array<i64: 24, 128>}, {pipeline_mode = #tpu.pipeline_mode<synchronous>, transform_indices = @transform_3, window_bounds = array<i64: 1, 128>}, {pipeline_mode = #tpu.pipeline_mode<synchronous>, transform_indices = @transform_4, window_bounds = array<i64: 128, 128>}, {pipeline_mode = #tpu.pipeline_mode<synchronous>, transform_indices = @transform_5, window_bounds = array<i64: 1, 128>}, {transform_indices = @transform_6, window_bounds = array<i64: 16, 128>}]} {
    %c0 = arith.constant 0 : index
    %c0_0 = arith.constant 0 : index
    %c0_1 = arith.constant 0 : index
    %0 = vector.load %arg3[%c0, %c0_0, %c0_1] : memref<1x16x24xf32, #tpu.memory_space<vmem>>, vector<1x16x24xf32>
    %1 = vector.shape_cast %0 : vector<1x16x24xf32> to vector<16x24xf32>
    %c0_2 = arith.constant 0 : index
    %c0_3 = arith.constant 0 : index
    %2 = vector.load %arg4[%c0_2, %c0_3] : memref<24x128xf32, #tpu.memory_space<vmem>>, vector<24x128xf32>
    %cst = arith.constant dense<0.000000e+00> : vector<16x128xf32>
    %3 = tpu.matmul %1, %2, %cst {dimension_numbers = #tpu.dot_dimension_numbers<[1], [0], [0], [1], [0, 0, 1, 1], [], []>} : vector<16x24xf32>, vector<24x128xf32>, vector<16x128xf32> -> vector<16x128xf32>
    %c0_4 = arith.constant 0 : index
    %c0_5 = arith.constant 0 : index
    %4 = vector.load %arg5[%c0_4, %c0_5] : memref<1x128xf32, #tpu.memory_space<vmem>>, vector<1x128xf32>
    %5 = vector.broadcast %4 : vector<1x128xf32> to vector<16x128xf32>
    %6 = arith.addf %3, %5 : vector<16x128xf32>
    %c0_6 = arith.constant 0 : index
    %c0_7 = arith.constant 0 : index
    %c0_8 = arith.constant 0 : index
    %7 = vector.load %arg2[%c0_6, %c0_7, %c0_8] : memref<1x1x128xf32, #tpu.memory_space<vmem>>, vector<1x1x128xf32>
    %8 = vector.shape_cast %7 : vector<1x1x128xf32> to vector<1x128xf32>
    %9 = vector.broadcast %8 : vector<1x128xf32> to vector<16x128xf32>
    %10 = arith.mulf %9, %6 : vector<16x128xf32>
    %cst_9 = arith.constant 0.000000e+00 : f32
    %11 = vector.broadcast %cst_9 : f32 to vector<16x128xf32>
    %12 = arith.maximumf %10, %11 : vector<16x128xf32>
    %c0_10 = arith.constant 0 : index
    %c0_11 = arith.constant 0 : index
    %13 = vector.load %arg6[%c0_10, %c0_11] : memref<128x128xf32, #tpu.memory_space<vmem>>, vector<128x128xf32>
    %cst_12 = arith.constant dense<0.000000e+00> : vector<16x128xf32>
    %14 = tpu.matmul %12, %13, %cst_12 {dimension_numbers = #tpu.dot_dimension_numbers<[1], [0], [0], [1], [0, 0, 1, 1], [], []>} : vector<16x128xf32>, vector<128x128xf32>, vector<16x128xf32> -> vector<16x128xf32>
    %c0_13 = arith.constant 0 : index
    %c0_14 = arith.constant 0 : index
    %15 = vector.load %arg7[%c0_13, %c0_14] : memref<1x128xf32, #tpu.memory_space<vmem>>, vector<1x128xf32>
    %16 = vector.broadcast %15 : vector<1x128xf32> to vector<16x128xf32>
    %17 = arith.addf %14, %16 : vector<16x128xf32>
    %c0_15 = arith.constant 0 : index
    %c0_16 = arith.constant 0 : index
    %18 = vector.load %arg8[%c0_15, %c0_16] : memref<16x128xf32, #tpu.memory_space<vmem>>, vector<16x128xf32>
    tpu.vector_store %arg8[%c0_15, %c0_16], %17 {strides = array<i32>} : memref<16x128xf32, #tpu.memory_space<vmem>>, vector<16x128xf32>,
    return
  }
  func.func @transform_0(%arg0: i32, %arg1: i32) -> (i32, i32, i32) {
    %c0_i32 = arith.constant 0 : i32
    %c0_i32_0 = arith.constant 0 : i32
    %c0_i32_1 = arith.constant 0 : i32
    return %arg0, %c0_i32, %c0_i32_0 : i32, i32, i32
  }
  func.func @transform_1(%arg0: i32, %arg1: i32) -> (i32, i32, i32) {
    %c0_i32 = arith.constant 0 : i32
    %c0_i32_0 = arith.constant 0 : i32
    return %arg0, %arg1, %c0_i32 : i32, i32, i32
  }
  func.func @transform_2(%arg0: i32, %arg1: i32) -> (i32, i32) {
    %c0_i32 = arith.constant 0 : i32
    %c0_i32_0 = arith.constant 0 : i32
    %c0_i32_1 = arith.constant 0 : i32
    return %c0_i32, %c0_i32_0 : i32, i32
  }
  func.func @transform_3(%arg0: i32, %arg1: i32) -> (i32, i32) {
    %c0_i32 = arith.constant 0 : i32
    %c0_i32_0 = arith.constant 0 : i32
    %c0_i32_1 = arith.constant 0 : i32
    return %c0_i32, %c0_i32_0 : i32, i32
  }
  func.func @transform_4(%arg0: i32, %arg1: i32) -> (i32, i32) {
    %c0_i32 = arith.constant 0 : i32
    %c0_i32_0 = arith.constant 0 : i32
    %c0_i32_1 = arith.constant 0 : i32
    return %c0_i32, %c0_i32_0 : i32, i32
  }
  func.func @transform_5(%arg0: i32, %arg1: i32) -> (i32, i32) {
    %c0_i32 = arith.constant 0 : i32
    %c0_i32_0 = arith.constant 0 : i32
    %c0_i32_1 = arith.constant 0 : i32
    return %c0_i32, %c0_i32_0 : i32, i32
  }
  func.func @transform_6(%arg0: i32, %arg1: i32) -> (i32, i32) {
    %c0_i32 = arith.constant 0 : i32
    return %arg1, %arg0 : i32, i32
  }
}

module attributes {stable_mosaic.version = 11 : i64} {
  func.func @_mbf_kernel(%arg0: i32, %arg1: i32, %arg2: memref<1x1x128xf32, #tpu.memory_space<vmem>>, %arg3: memref<1x16x24xf32, #tpu.memory_space<vmem>>, %arg4: memref<24x128xf32, #tpu.memory_space<vmem>>, %arg5: memref<1x128xf32, #tpu.memory_space<vmem>>, %arg6: memref<128x128xf32, #tpu.memory_space<vmem>>, %arg7: memref<1x128xf32, #tpu.memory_space<vmem>>, %arg8: memref<16x128xf32, #tpu.memory_space<vmem>>) attributes {dimension_semantics = [#tpu.dimension_semantics<parallel>, #tpu.dimension_semantics<parallel>], iteration_bounds = array<i64: 6, 1>, scalar_prefetch = 0 : i64, scratch_operands = 0 : i64, tpu.core_type = #tpu.core_type<tc>, window_params = [{transform_indices = @transform_0, window_bounds = array<i64: 1, 1, 128>}, {transform_indices = @transform_1, window_bounds = array<i64: 1, 16, 24>}, {pipeline_mode = #tpu.pipeline_mode<synchronous>, transform_indices = @transform_2, window_bounds = array<i64: 24, 128>}, {pipeline_mode = #tpu.pipeline_mode<synchronous>, transform_indices = @transform_3, window_bounds = array<i64: 1, 128>}, {pipeline_mode = #tpu.pipeline_mode<synchronous>, transform_indices = @transform_4, window_bounds = array<i64: 128, 128>}, {pipeline_mode = #tpu.pipeline_mode<synchronous>, transform_indices = @transform_5, window_bounds = array<i64: 1, 128>}, {transform_indices = @transform_6, window_bounds = array<i64: 16, 128>}]} {
    %c0 = arith.constant 0 : index
    %c0_0 = arith.constant 0 : index
    %c0_1 = arith.constant 0 : index
    %0 = vector.load %arg3[%c0, %c0_0, %c0_1] : memref<1x16x24xf32, #tpu.memory_space<vmem>>, vector<1x16x24xf32>
    %1 = vector.shape_cast %0 : vector<1x16x24xf32> to vector<16x24xf32>
    %c0_2 = arith.constant 0 : index
    %c0_3 = arith.constant 0 : index
    %2 = vector.load %arg4[%c0_2, %c0_3] : memref<24x128xf32, #tpu.memory_space<vmem>>, vector<24x128xf32>
    %cst = arith.constant dense<0.000000e+00> : vector<16x128xf32>
    %3 = tpu.matmul %1, %2, %cst {dimension_numbers = #tpu.dot_dimension_numbers<[1], [0], [0], [1], [0, 0, 1, 1], [], []>} : vector<16x24xf32>, vector<24x128xf32>, vector<16x128xf32> -> vector<16x128xf32>
    %c0_4 = arith.constant 0 : index
    %c0_5 = arith.constant 0 : index
    %4 = vector.load %arg5[%c0_4, %c0_5] : memref<1x128xf32, #tpu.memory_space<vmem>>, vector<1x128xf32>
    %5 = vector.broadcast %4 : vector<1x128xf32> to vector<16x128xf32>
    %6 = arith.addf %3, %5 : vector<16x128xf32>
    %c0_6 = arith.constant 0 : index
    %c0_7 = arith.constant 0 : index
    %c0_8 = arith.constant 0 : index
    %7 = vector.load %arg2[%c0_6, %c0_7, %c0_8] : memref<1x1x128xf32, #tpu.memory_space<vmem>>, vector<1x1x128xf32>
    %8 = vector.shape_cast %7 : vector<1x1x128xf32> to vector<1x128xf32>
    %9 = vector.broadcast %8 : vector<1x128xf32> to vector<16x128xf32>
    %10 = arith.mulf %9, %6 : vector<16x128xf32>
    %cst_9 = arith.constant 0.000000e+00 : f32
    %11 = vector.broadcast %cst_9 : f32 to vector<16x128xf32>
    %12 = arith.maximumf %10, %11 : vector<16x128xf32>
    %c0_10 = arith.constant 0 : index
    %c0_11 = arith.constant 0 : index
    %13 = vector.load %arg6[%c0_10, %c0_11] : memref<128x128xf32, #tpu.memory_space<vmem>>, vector<128x128xf32>
    %cst_12 = arith.constant dense<0.000000e+00> : vector<16x128xf32>
    %14 = tpu.matmul %12, %13, %cst_12 {dimension_numbers = #tpu.dot_dimension_numbers<[1], [0], [0], [1], [0, 0, 1, 1], [], []>} : vector<16x128xf32>, vector<128x128xf32>, vector<16x128xf32> -> vector<16x128xf32>
    %c0_13 = arith.constant 0 : index
    %c0_14 = arith.constant 0 : index
    %15 = vector.load %arg7[%c0_13, %c0_14] : memref<1x128xf32, #tpu.memory_space<vmem>>, vector<1x128xf32>
    %16 = vector.broadcast %15 : vector<1x128xf32> to vector<16x128xf32>
    %17 = arith.addf %14, %16 : vector<16x128xf32>
    %c0_15 = arith.constant 0 : index
    %c0_16 = arith.constant 0 : index
    %18 = vector.load %arg8[%c0_15, %c0_16] : memref<16x128xf32, #tpu.memory_space<vmem>>, vector<16x128xf32>
    tpu.vector_store %arg8[%c0_15, %c0_16], %17 {strides = array<i32>} : memref<16x128xf32, #tpu.memory_space<vmem>>, vector<16x128xf32>,
    return
  }
  func.func @transform_0(%arg0: i32, %arg1: i32) -> (i32, i32, i32) {
    %c0_i32 = arith.constant 0 : i32
    %c0_i32_0 = arith.constant 0 : i32
    %c0_i32_1 = arith.constant 0 : i32
    return %arg0, %c0_i32, %c0_i32_0 : i32, i32, i32
  }
  func.func @transform_1(%arg0: i32, %arg1: i32) -> (i32, i32, i32) {
    %c0_i32 = arith.constant 0 : i32
    %c0_i32_0 = arith.constant 0 : i32
    return %arg0, %arg1, %c0_i32 : i32, i32, i32
  }
  func.func @transform_2(%arg0: i32, %arg1: i32) -> (i32, i32) {
    %c0_i32 = arith.constant 0 : i32
    %c0_i32_0 = arith.constant 0 : i32
    %c0_i32_1 = arith.constant 0 : i32
    return %c0_i32, %c0_i32_0 : i32, i32
  }
  func.func @transform_3(%arg0: i32, %arg1: i32) -> (i32, i32) {
    %c0_i32 = arith.constant 0 : i32
    %c0_i32_0 = arith.constant 0 : i32
    %c0_i32_1 = arith.constant 0 : i32
    return %c0_i32, %c0_i32_0 : i32, i32
  }
  func.func @transform_4(%arg0: i32, %arg1: i32) -> (i32, i32) {
    %c0_i32 = arith.constant 0 : i32
    %c0_i32_0 = arith.constant 0 : i32
    %c0_i32_1 = arith.constant 0 : i32
    return %c0_i32, %c0_i32_0 : i32, i32
  }
  func.func @transform_5(%arg0: i32, %arg1: i32) -> (i32, i32) {
    %c0_i32 = arith.constant 0 : i32
    %c0_i32_0 = arith.constant 0 : i32
    %c0_i32_1 = arith.constant 0 : i32
    return %c0_i32, %c0_i32_0 : i32, i32
  }
  func.func @transform_6(%arg0: i32, %arg1: i32) -> (i32, i32) {
    %c0_i32 = arith.constant 0 : i32
    return %arg1, %arg0 : i32, i32
  }
}

</mosaic_0001>

<llo_original>
// kernel: tpu_custom_call.1
$region0: #{tpu_custom_call.1}
  #allocation0 [shape = 'u32[]', space=smem, size = 0x4, offset = 0x4, fixed_abs, tag = 'smem constant byte address 0x4 - core index']
  #allocation1 [shape = 'u32[144,128]{1,0:T(1,128)}', space=vmem, size = 0x12000, scoped, tag = 'internal scratch']
  %s0 = inlined_call_operand.hbm [shape: f32[6,1,128], index: 0, kind: input, shape index: {}]
  %s1 = inlined_call_operand.hbm [shape: f32[6,16,24], index: 1, kind: input, shape index: {}]
  %s2 = inlined_call_operand.hbm [shape: f32[24,128], index: 2, kind: input, shape index: {}]
  %s3 = inlined_call_operand.vmem [shape: f32[1,128], index: 3, kind: input, shape index: {}]
  %s4 = inlined_call_operand.hbm [shape: f32[128,128], index: 4, kind: input, shape index: {}]
  %s5 = inlined_call_operand.vmem [shape: f32[1,128], index: 5, kind: input, shape index: {}]
  %s6 = inlined_call_operand.hbm [shape: f32[16,768], index: 6, kind: output, shape index: {}]
  %s7 = sld [smem:[#allocation0]]
  $region73: #{tpu_custom_call.1} parent=0
    _
  %s9 = ssub.s32 1, %s7
  %s10 = scalar_select 0, %s9, %s7
  $region1: #{tpu_custom_call.1} parent=0
    #allocation2 [shape = 'u8[1024]{0}', space=vmem, size = 0x400, scoped, tag = 'input window, operand 0']
    #allocation3 [shape = 's32[2]{0}', space=sflag, size = 0x8, scoped, tag = 'scoped memory for tpu_custom_call.1']
    #allocation4 [shape = 's32[2]{0}', space=sflag, size = 0x8, scoped, tag = 'scoped memory for tpu_custom_call.1']
    #allocation5 [shape = 'u8[16384]{0}', space=vmem, size = 0x4000, scoped, tag = 'input window, operand 1']
    #allocation6 [shape = 's32[2]{0}', space=sflag, size = 0x8, scoped, tag = 'scoped memory for tpu_custom_call.1']
    #allocation7 [shape = 'u8[12288]{0}', space=vmem, size = 0x3000, scoped, tag = 'input window, operand 2, single buffered']
    #allocation8 [shape = 'u8[65536]{0}', space=vmem, size = 0x10000, scoped, tag = 'input window, operand 4, single buffered']
    #allocation9 [shape = 's32[1]{0}', space=sflag, size = 0x4, scoped, tag = 'scoped memory for tpu_custom_call.1']
    #allocation10 [shape = 'u8[16384]{0}', space=vmem, size = 0x4000, scoped, tag = 'output window, operand 0']
    %11 = vsyncpa [#allocation3], 0
    %s12 = scalar_lea.sflag [#allocation3], 1
    %13 = vsyncpa %s12, 0
    %14 = vsyncpa [#allocation6], 0
    %s15 = scalar_lea.sflag [#allocation6], 1
    %16 = vsyncpa %s15, 0
    %17 = vsyncpa [#allocation9], 0
    %18 = vsyncpa [#allocation4], 0
    %s19 = scalar_lea.sflag [#allocation4], 1
    %20 = vsyncpa %s19, 0
    loop: start=0, step=1, limit=8
    $region2: #{tpu_custom_call.1} parent=1 // loop_pre_header
      _
    $region3: #{tpu_custom_call.1} parent=1 // loop_header
      %s22 = sphi 0, %s26
      %p23 = scmp.ge.s32.totalorder %s22, 8
      %s29 = sphi 0, %s41
      %s30 = sphi 0, %s37
      %s31 = sphi 0, %s29
      %s32 = sphi 0, %s30
      %s33 = sphi 0, %s31
      %s34 = sphi 0, %s32
      %s44 = sphi 0, %s46
      %s47 = sphi 0, %s44
      %s48 = sphi 0, %s47
      %s64 = sphi 0, %s48
      %s72 = sphi 0, %s74
      %s75 = sphi 0, %s72
      %s76 = sphi 0, %s75
      %s92 = sphi 0, %s76
      %s96 = sphi 0, %s96
      %s98 = sphi 0, %s96
      %s99 = sphi 0, %s98
      %s113 = sphi 0, %s99
      %s117 = sphi 0, %s117
      %s119 = sphi 0, %s117
      %s120 = sphi 0, %s119
      %s134 = sphi 0, %s120
      %s138 = sphi 0, %s138
      %s140 = sphi 0, %s138
      %s141 = sphi 0, %s140
      %s155 = sphi 0, %s141
      %s159 = sphi 0, %s159
      %s161 = sphi 0, %s159
      %s162 = sphi 0, %s161
      %s176 = sphi 0, %s162
      %s184 = sphi 0, %s186
      %s187 = sphi 0, %s184
      %s188 = sphi 0, %s187
      %s204 = sphi 0, %s188
    $region4: #{tpu_custom_call.1} parent=1 // loop_header_branch
      %25 = sbr.rel (%p23) target = $region8
    $region5: #{tpu_custom_call.1} parent=1 // loop_body
      %s27 = ssub.s32 %s22, 1
      %s28 = ssub.s32 %s22, 2
      %s35 = sadd.s32 1, %s30
      %p36 = scmp.ge.s32.totalorder %s35, 1
      %s37 = scalar_select %p36, 0, %s35
      %s38 = sadd.s32 1, %s29
      %s39 = scalar_select %p36, %s38, %s29
      %p40 = scmp.ge.s32.totalorder %s39, 6
      %s41 = scalar_select %p40, 0, %s39
      %s42 = ssub.s32 %s29, %s41
      %p43 = scmp.eq.s32.totalorder %s42, 0
      %s45 = sadd.s32 %s44, 1
      %s46 = scalar_select %p43, %s44, %s45
      %p49 = pneg %p43
      %p50 = scmp.eq.s32.totalorder %s22, 5
      %p51 = por %p49, %p50
      %p52 = scmp.ne.s32.totalorder %s44, %s47
      %p53 = scmp.eq.s32.totalorder %s22, 0
      %p54 = por %p52, %p53
      %p55 = scmp.ne.s32.totalorder %s44, %s47
      %p56 = scmp.eq.s32.totalorder %s27, 5
      %p57 = por %p55, %p56
      %p58 = scmp.ne.s32.totalorder %s47, %s48
      %p59 = scmp.eq.s32.totalorder %s27, 0
      %p60 = por %p58, %p59
      %p61 = scmp.ne.s32.totalorder %s47, %s48
      %p62 = scmp.eq.s32.totalorder %s28, 5
      %p63 = por %p61, %p62
      %p65 = scmp.ne.s32.totalorder %s48, %s64
      %p66 = scmp.eq.s32.totalorder %s28, 0
      %p67 = por %p65, %p66
      %s68 = ssub.s32 %s29, %s41
      %s69 = ssub.s32 %s30, %s37
      %s70 = sor.u32 %s68, %s69
      %p71 = scmp.eq.s32.totalorder %s70, 0
      %s73 = sadd.s32 %s72, 1
      %s74 = scalar_select %p71, %s72, %s73
      %p77 = pneg %p71
      %p78 = scmp.eq.s32.totalorder %s22, 5
      %p79 = por %p77, %p78
      %p80 = scmp.ne.s32.totalorder %s72, %s75
      %p81 = scmp.eq.s32.totalorder %s22, 0
      %p82 = por %p80, %p81
      %p83 = scmp.ne.s32.totalorder %s72, %s75
      %p84 = scmp.eq.s32.totalorder %s27, 5
      %p85 = por %p83, %p84
      %p86 = scmp.ne.s32.totalorder %s75, %s76
      %p87 = scmp.eq.s32.totalorder %s27, 0
      %p88 = por %p86, %p87
      %p89 = scmp.ne.s32.totalorder %s75, %s76
      %p90 = scmp.eq.s32.totalorder %s28, 5
      %p91 = por %p89, %p90
      %p93 = scmp.ne.s32.totalorder %s76, %s92
      %p94 = scmp.eq.s32.totalorder %s28, 0
      %p95 = por %p93, %p94
      %s97 = sadd.s32 %s96, 1
      %p100 = scmp.eq.s32.totalorder %s22, 5
      %p101 = scmp.ne.s32.totalorder %s96, %s98
      %p102 = scmp.eq.s32.totalorder %s22, 0
      %p103 = por %p101, %p102
      %p104 = scmp.ne.s32.totalorder %s96, %s98
      %p105 = scmp.eq.s32.totalorder %s27, 5
      %p106 = por %p104, %p105
      %p107 = scmp.ne.s32.totalorder %s98, %s99
      %p108 = scmp.eq.s32.totalorder %s27, 0
      %p109 = por %p107, %p108
      %p110 = scmp.ne.s32.totalorder %s98, %s99
      %p111 = scmp.eq.s32.totalorder %s28, 5
      %p112 = por %p110, %p111
      %p114 = scmp.ne.s32.totalorder %s99, %s113
      %p115 = scmp.eq.s32.totalorder %s28, 0
      %p116 = por %p114, %p115
      %s118 = sadd.s32 %s117, 1
      %p121 = scmp.eq.s32.totalorder %s22, 5
      %p122 = scmp.ne.s32.totalorder %s117, %s119
      %p123 = scmp.eq.s32.totalorder %s22, 0
      %p124 = por %p122, %p123
      %p125 = scmp.ne.s32.totalorder %s117, %s119
      %p126 = scmp.eq.s32.totalorder %s27, 5
      %p127 = por %p125, %p126
      %p128 = scmp.ne.s32.totalorder %s119, %s120
      %p129 = scmp.eq.s32.totalorder %s27, 0
      %p130 = por %p128, %p129
      %p131 = scmp.ne.s32.totalorder %s119, %s120
      %p132 = scmp.eq.s32.totalorder %s28, 5
      %p133 = por %p131, %p132
      %p135 = scmp.ne.s32.totalorder %s120, %s134
      %p136 = scmp.eq.s32.totalorder %s28, 0
      %p137 = por %p135, %p136
      %s139 = sadd.s32 %s138, 1
      %p142 = scmp.eq.s32.totalorder %s22, 5
      %p143 = scmp.ne.s32.totalorder %s138, %s140
      %p144 = scmp.eq.s32.totalorder %s22, 0
      %p145 = por %p143, %p144
      %p146 = scmp.ne.s32.totalorder %s138, %s140
      %p147 = scmp.eq.s32.totalorder %s27, 5
      %p148 = por %p146, %p147
      %p149 = scmp.ne.s32.totalorder %s140, %s141
      %p150 = scmp.eq.s32.totalorder %s27, 0
      %p151 = por %p149, %p150
      %p152 = scmp.ne.s32.totalorder %s140, %s141
      %p153 = scmp.eq.s32.totalorder %s28, 5
      %p154 = por %p152, %p153
      %p156 = scmp.ne.s32.totalorder %s141, %s155
      %p157 = scmp.eq.s32.totalorder %s28, 0
      %p158 = por %p156, %p157
      %s160 = sadd.s32 %s159, 1
      %p163 = scmp.eq.s32.totalorder %s22, 5
      %p164 = scmp.ne.s32.totalorder %s159, %s161
      %p165 = scmp.eq.s32.totalorder %s22, 0
      %p166 = por %p164, %p165
      %p167 = scmp.ne.s32.totalorder %s159, %s161
      %p168 = scmp.eq.s32.totalorder %s27, 5
      %p169 = por %p167, %p168
      %p170 = scmp.ne.s32.totalorder %s161, %s162
      %p171 = scmp.eq.s32.totalorder %s27, 0
      %p172 = por %p170, %p171
      %p173 = scmp.ne.s32.totalorder %s161, %s162
      %p174 = scmp.eq.s32.totalorder %s28, 5
      %p175 = por %p173, %p174
      %p177 = scmp.ne.s32.totalorder %s162, %s176
      %p178 = scmp.eq.s32.totalorder %s28, 0
      %p179 = por %p177, %p178
      %s180 = ssub.s32 %s30, %s37
      %s181 = ssub.s32 %s29, %s41
      %s182 = sor.u32 %s180, %s181
      %p183 = scmp.eq.s32.totalorder %s182, 0
      %s185 = sadd.s32 %s184, 1
      %s186 = scalar_select %p183, %s184, %s185
      %p189 = pneg %p183
      %p190 = scmp.eq.s32.totalorder %s22, 5
      %p191 = por %p189, %p190
      %p192 = scmp.ne.s32.totalorder %s184, %s187
      %p193 = scmp.eq.s32.totalorder %s22, 0
      %p194 = por %p192, %p193
      %p195 = scmp.ne.s32.totalorder %s184, %s187
      %p196 = scmp.eq.s32.totalorder %s27, 5
      %p197 = por %p195, %p196
      %p198 = scmp.ne.s32.totalorder %s187, %s188
      %p199 = scmp.eq.s32.totalorder %s27, 0
      %p200 = por %p198, %p199
      %p201 = scmp.ne.s32.totalorder %s187, %s188
      %p202 = scmp.eq.s32.totalorder %s28, 5
      %p203 = por %p201, %p202
      %p205 = scmp.ne.s32.totalorder %s188, %s204
      %p206 = scmp.eq.s32.totalorder %s28, 0
      %p207 = por %p205, %p206
      %p208 = scmp.le.s32.totalorder 1, %s22
      %p209 = scmp.lt.s32.totalorder %s22, 7
      %p210 = pnand %p208, %p209
      %p211 = pneg %p210
      // Predicated region
      $region9: #{tpu_custom_call.1} parent=5 // pred_check
        _
      $region10: #{tpu_custom_call.1} parent=5 // pred_check_branch
        %213 = sbr.rel (%p210) target = $region12
      $region11: #{tpu_custom_call.1} parent=5 // pred_region
        %s214 = ssub.s32 %s22, 1
        // Predicated region
        $region13: #{tpu_custom_call.1} parent=11 // pred_check
          %p215 = pneg %p109
        $region14: #{tpu_custom_call.1} parent=11 // pred_check_branch
          %217 = sbr.rel (%p215) target = $region16
        $region15: #{tpu_custom_call.1} parent=11 // pred_region
          %s219 = ssub.s32 384, 384
          %220 = vsyncadd [#allocation6], %s219
          %s221 = sshll.u32 [#allocation7], 4
          %s222 = int_to_ptr.vmem [resolvable:$true] %s221
          %227 = dma.hbm_to_vmem [thread:$0]  %s2, 384, %s222, [#allocation6], 128, 128, 8
        $region16: #{tpu_custom_call.1} parent=11 // pred_fallthru
          _
        // Predicated region
        $region17: #{tpu_custom_call.1} parent=11 // pred_check
          %p228 = pneg %p130
        $region18: #{tpu_custom_call.1} parent=11 // pred_check_branch
          %230 = sbr.rel (%p228) target = $region20
        $region19: #{tpu_custom_call.1} parent=11 // pred_region
          _
        $region20: #{tpu_custom_call.1} parent=11 // pred_fallthru
          _
        // Predicated region
        $region21: #{tpu_custom_call.1} parent=11 // pred_check
          %p231 = pneg %p151
        $region22: #{tpu_custom_call.1} parent=11 // pred_check_branch
          %233 = sbr.rel (%p231) target = $region24
        $region23: #{tpu_custom_call.1} parent=11 // pred_region
          %s235 = ssub.s32 2048, 2048
          %236 = vsyncadd [#allocation9], %s235
          %s237 = sshll.u32 [#allocation8], 4
          %s238 = int_to_ptr.vmem [resolvable:$true] %s237
          %243 = dma.hbm_to_vmem [thread:$0]  %s4, 2048, %s238, [#allocation9], 128, 128, 8
        $region24: #{tpu_custom_call.1} parent=11 // pred_fallthru
          _
        // Predicated region
        $region25: #{tpu_custom_call.1} parent=11 // pred_check
          %p244 = pneg %p172
        $region26: #{tpu_custom_call.1} parent=11 // pred_check_branch
          %246 = sbr.rel (%p244) target = $region28
        $region27: #{tpu_custom_call.1} parent=11 // pred_region
          _
        $region28: #{tpu_custom_call.1} parent=11 // pred_fallthru
          _
      $region12: #{tpu_custom_call.1} parent=5 // pred_fallthru
        _
      %p247 = scmp.lt.s32.totalorder %s22, 6
      // Predicated region
      $region29: #{tpu_custom_call.1} parent=5 // pred_check
        %p248 = pneg %p247
      $region30: #{tpu_custom_call.1} parent=5 // pred_check_branch
        %250 = sbr.rel (%p248) target = $region32
      $region31: #{tpu_custom_call.1} parent=5 // pred_region
        // Predicated region
        $region33: #{tpu_custom_call.1} parent=31 // pred_check
          %p251 = pneg %p54
        $region34: #{tpu_custom_call.1} parent=31 // pred_check_branch
          %253 = sbr.rel (%p251) target = $region36
        $region35: #{tpu_custom_call.1} parent=31 // pred_region
          %s254 = sand.u32 %s44, 1
          %s255 = scalar_lea.sflag [#allocation3], %s254
          %s256 = sand.u32 %s44, 1
          %s257 = scalar_lea.vmem [#allocation2], %s256
          %s259 = ssub.s32 16, 16
          %260 = vsyncadd %s255, %s259
          %s261 = smul.addr %s29, 16
          %s262 = scalar_lea.hbm %s0, %s261
          %s264 = sshll.u32 %s257, 4
          %s265 = int_to_ptr.vmem [resolvable:$true] %s264
          %267 = dma.hbm_to_vmem [thread:$0]  %s262, 16, %s265, %s255
        $region36: #{tpu_custom_call.1} parent=31 // pred_fallthru
          _
        // Predicated region
        $region37: #{tpu_custom_call.1} parent=31 // pred_check
          %p268 = pneg %p82
        $region38: #{tpu_custom_call.1} parent=31 // pred_check_branch
          %270 = sbr.rel (%p268) target = $region40
        $region39: #{tpu_custom_call.1} parent=31 // pred_region
          %s271 = sand.u32 %s22, 1
          %s272 = scalar_lea.sflag [#allocation6], %s271
          %s273 = sand.u32 %s72, 1
          %s274 = smul.addr %s273, 16
          %s275 = scalar_lea.vmem [#allocation5], %s274
          %s276 = smul.u32 2, %s30
          %s278 = ssub.s32 256, 256
          %279 = vsyncadd %s272, %s278
          %s280 = smul.addr %s29, 2
          %s281 = sadd.s32 %s276, %s280
          %s282 = smul.addr %s281, 128
          %s283 = scalar_lea.hbm %s1, %s282
          %s284 = sshll.u32 %s275, 4
          %s285 = int_to_ptr.vmem [resolvable:$true] %s284
          %290 = dma.hbm_to_vmem [thread:$0]  %s283, 256, %s285, %s272, 128, 128, 8
        $region40: #{tpu_custom_call.1} parent=31 // pred_fallthru
          _
      $region32: #{tpu_custom_call.1} parent=5 // pred_fallthru
        _
      %p291 = scmp.le.s32.totalorder 1, %s22
      %p292 = scmp.lt.s32.totalorder %s22, 7
      %p293 = pnand %p291, %p292
      %p294 = pneg %p293
      // Predicated region
      $region41: #{tpu_custom_call.1} parent=5 // pred_check
        _
      $region42: #{tpu_custom_call.1} parent=5 // pred_check_branch
        %296 = sbr.rel (%p293) target = $region44
      $region43: #{tpu_custom_call.1} parent=5 // pred_region
        %s297 = ssub.s32 %s22, 1
        %s298 = sand.u32 %s47, 1
        %s299 = scalar_lea.sflag [#allocation3], %s298
        %s300 = sand.u32 %s47, 1
        %s301 = scalar_lea.vmem [#allocation2], %s300
        // Predicated region
        $region45: #{tpu_custom_call.1} parent=43 // pred_check
          %p302 = pneg %p60
        $region46: #{tpu_custom_call.1} parent=43 // pred_check_branch
          %304 = sbr.rel (%p302) target = $region48
        $region47: #{tpu_custom_call.1} parent=43 // pred_region
          %305 = dma.done %s299, 16
        $region48: #{tpu_custom_call.1} parent=43 // pred_fallthru
          _
        %s306 = sand.u32 %s27, 1
        %s307 = scalar_lea.sflag [#allocation6], %s306
        %s308 = sand.u32 %s75, 1
        %s309 = smul.addr %s308, 16
        %s310 = scalar_lea.vmem [#allocation5], %s309
        // Predicated region
        $region49: #{tpu_custom_call.1} parent=43 // pred_check
          %p311 = pneg %p88
        $region50: #{tpu_custom_call.1} parent=43 // pred_check_branch
          %313 = sbr.rel (%p311) target = $region52
        $region51: #{tpu_custom_call.1} parent=43 // pred_region
          %314 = dma.done %s307, 256
        $region52: #{tpu_custom_call.1} parent=43 // pred_fallthru
          _
        // Predicated region
        $region53: #{tpu_custom_call.1} parent=43 // pred_check
          %p315 = pneg %p109
        $region54: #{tpu_custom_call.1} parent=43 // pred_check_branch
          %317 = sbr.rel (%p315) target = $region56
        $region55: #{tpu_custom_call.1} parent=43 // pred_region
          %318 = dma.done [#allocation6], 384
        $region56: #{tpu_custom_call.1} parent=43 // pred_fallthru
          _
        // Predicated region
        $region57: #{tpu_custom_call.1} parent=43 // pred_check
          %p319 = pneg %p151
        $region58: #{tpu_custom_call.1} parent=43 // pred_check_branch
          %321 = sbr.rel (%p319) target = $region60
        $region59: #{tpu_custom_call.1} parent=43 // pred_region
          %322 = dma.done [#allocation9], 2048
        $region60: #{tpu_custom_call.1} parent=43 // pred_fallthru
          _
        %s323 = sand.u32 %s47, 1
        %s324 = scalar_lea.sflag [#allocation3], %s323
        %s325 = sand.u32 %s47, 1
        %s326 = scalar_lea.vmem [#allocation2], %s325
        %p327 = pneg %p60
        %p328 = pneg %p57
        %s329 = sand.u32 %s27, 1
        %s330 = scalar_lea.sflag [#allocation6], %s329
        %s331 = sand.u32 %s75, 1
        %s332 = smul.addr %s331, 16
        %s333 = scalar_lea.vmem [#allocation5], %s332
        %p334 = pneg %p88
        %p335 = pneg %p85
        %p336 = pneg %p109
        %p337 = pneg %p106
        %p338 = pneg %p130
        %p339 = pneg %p127
        %p340 = pneg %p151
        %p341 = pneg %p148
        %p342 = pneg %p172
        %p343 = pneg %p169
        %p344 = pneg %p200
        %p345 = pneg %p197
        %s346 = sand.u32 %s187, 1
        %s347 = scalar_lea.sflag [#allocation4], %s346
        %s348 = sand.u32 %s187, 1
        %s349 = smul.addr %s348, 16
        %s350 = scalar_lea.vmem [#allocation10], %s349
        %s351 = smul.u32 2, %s32
        %s352 = smul.u32 2, %s32
        %v353 = vld [vmem:[%s310] sm:$0xff]
        %v354 = vld [vmem:[%s310 + $0x8] sm:$0xff]
        %v355 = vld [vmem:[#allocation7] sm:$0xff]
        %v356 = vld [vmem:[#allocation7 + $0x8] sm:$0xff]
        %v357 = vld [vmem:[#allocation7 + $0x10] sm:$0xff]
        %v358 = vld [vmem:[%s3] sm:$0x1]
        %v360 = vlaneseq
        %v361 = vshrl.u32 %v360, 7
        %v362 = vsub.s32 0, %v361
        %v363 = vrot.slane %v358, %v362
        %vm365 = vcmask 195584
        %v367 = vsel %vm365, %v353, 0
        %v370 = vsel %vm365, %v354, 0
        %372 = vmatprep.subr.mxu0 0.0
        %373 = vmatpush1.msra.mxu0 %v355
        %374 = vmatprep.subr.mxu0 0.0
        %375 = vmatpush1.msra.mxu0 %v356
        %376 = vmatprep.subr.mxu0 0.0
        %377 = vmatpush1.msra.mxu0 %v357
        %378 = vmatprep.subr.mxu0 0.0
        %379 = vmatpush1.msra.mxu0 0.0
        %380 = vmatprep.subr.mxu0 0.0
        %381 = vmatpush1.msra.mxu0 0.0
        %382 = vmatprep.subr.mxu0 0.0
        %383 = vmatpush1.msra.mxu0 0.0
        %384 = vmatprep.subr.mxu0 0.0
        %385 = vmatpush1.msra.mxu0 0.0
        %386 = vmatprep.subr.mxu0 0.0
        %387 = vmatpush1.msra.mxu0 0.0
        %388 = vmatprep.subr.mxu0 0.0
        %389 = vmatpush1.msra.mxu0 0.0
        %390 = vmatprep.subr.mxu0 0.0
        %391 = vmatpush1.msra.mxu0 0.0
        %392 = vmatprep.subr.mxu0 0.0
        %393 = vmatpush1.msra.mxu0 0.0
        %394 = vmatprep.subr.mxu0 0.0
        %395 = vmatpush1.msra.mxu0 0.0
        %396 = vmatprep.subr.mxu0 0.0
        %397 = vmatpush1.msra.mxu0 0.0
        %398 = vmatprep.subr.mxu0 0.0
        %399 = vmatpush1.msra.mxu0 0.0
        %400 = vmatprep.subr.mxu0 0.0
        %401 = vmatpush1.msra.mxu0 0.0
        %402 = vmatprep.subr.mxu0 0.0
        %403 = vmatpush1.msra.mxu0 0.0
        %404 = vmatprep.subr.mxu0 0.0
        %405 = vmatpush1.msra.mxu0 0.0
        %406 = vmatprep.subr.mxu0 0.0
        %407 = vmatpush1.msra.mxu0 0.0
        %408 = vmatprep.subr.mxu0 0.0
        %409 = vmatpush1.msra.mxu0 0.0
        %410 = vmatprep.subr.mxu0 0.0
        %411 = vmatpush1.msra.mxu0 0.0
        %412 = vmatprep.subr.mxu0 0.0
        %413 = vmatpush1.msra.mxu0 0.0
        %414 = vmatprep.subr.mxu0 0.0
        %415 = vmatpush1.msra.mxu0 0.0
        %416 = vmatprep.subr.mxu0 0.0
        %417 = vmatpush1.msra.mxu0 0.0
        %418 = vmatprep.subr.mxu0 0.0
        %419 = vmatpush1.msra.mxu0 0.0
        %420 = vmatprep.subr.mxu0 0.0
        %421 = vmatpush1.msra.mxu0 0.0
        %422 = vmatprep.subr.mxu0 0.0
        %423 = vmatpush1.msra.mxu0 0.0
        %424 = vmatprep.subr.mxu0 0.0
        %425 = vmatpush1.msra.mxu0 0.0
        %426 = vmatprep.subr.mxu0 0.0
        %427 = vmatpush1.msra.mxu0 0.0
        %428 = vmatprep.subr.mxu0 0.0
        %429 = vmatpush1.msra.mxu0 0.0
        %430 = vmatprep.subr.mxu0 0.0
        %431 = vmatpush1.msra.mxu0 0.0
        %432 = vmatprep.subr.mxu0 0.0
        %433 = vmatpush1.msra.mxu0 0.0
        %434 = vmatprep.subr.mxu0 0.0
        %435 = vmatpush1.msra.mxu0 0.0
        %436 = vmatprep.mubr.f32.mxu0 0.0
        %437 = vmatmul.mubr.f32.gmra.mrb[0].mxu0 %v367
        %v438 = vpop.f32.mrb[0].mxu0
        %v439 = vadd.f32 %v363, %v438
        %v440 = vpop.f32.mrb[0].mxu0
        %441 = vmatprep.mubr.f32.mxu0 0.0
        %442 = vmatmul.mubr.f32.gmra.mrb[0].mxu0 %v370
        %v443 = vpop.f32.mrb[0].mxu0
        %v444 = vadd.f32 %v363, %v443
        %v445 = vpop.f32.mrb[0].mxu0
        %446 = vdwg.mxu0
        %v447 = vld [vmem:[%s301] sm:$0x1]
        %v449 = vlaneseq
        %v450 = vshrl.u32 %v449, 7
        %v451 = vsub.s32 0, %v450
        %v452 = vrot.slane %v447, %v451
        %v454 = vmul.f32 %v452, %v439
        %v455 = vmul.f32 %v452, %v444
        %v456 = vmax.f32 %v454, 0.0
        %v457 = vmax.f32 %v455, 0.0
        %v458 = vld [vmem:[#allocation8] sm:$0xff]
        %v459 = vld [vmem:[#allocation8 + $0x8] sm:$0xff]
        %v460 = vld [vmem:[#allocation8 + $0x10] sm:$0xff]
        %v461 = vld [vmem:[#allocation8 + $0x18] sm:$0xff]
        %v462 = vld [vmem:[#allocation8 + $0x20] sm:$0xff]
        %v463 = vld [vmem:[#allocation8 + $0x28] sm:$0xff]
        %v464 = vld [vmem:[#allocation8 + $0x30] sm:$0xff]
        %v465 = vld [vmem:[#allocation8 + $0x38] sm:$0xff]
        %v466 = vld [vmem:[#allocation8 + $0x40] sm:$0xff]
        %v467 = vld [vmem:[#allocation8 + $0x48] sm:$0xff]
        %v468 = vld [vmem:[#allocation8 + $0x50] sm:$0xff]
        %v469 = vld [vmem:[#allocation8 + $0x58] sm:$0xff]
        %v470 = vld [vmem:[#allocation8 + $0x60] sm:$0xff]
        %v471 = vld [vmem:[#allocation8 + $0x68] sm:$0xff]
        %v472 = vld [vmem:[#allocation8 + $0x70] sm:$0xff]
        %v473 = vld [vmem:[#allocation8 + $0x78] sm:$0xff]
        %v474 = vld [vmem:[%s5] sm:$0x1]
        %v476 = vlaneseq
        %v477 = vshrl.u32 %v476, 7
        %v478 = vsub.s32 0, %v477
        %v479 = vrot.slane %v474, %v478
        %481 = vmatprep.subr.mxu0 0.0
        %482 = vmatpush1.msra.mxu0 %v458
        %483 = vmatprep.subr.mxu0 0.0
        %484 = vmatpush1.msra.mxu0 %v459
        %485 = vmatprep.subr.mxu0 0.0
        %486 = vmatpush1.msra.mxu0 %v460
        %487 = vmatprep.subr.mxu0 0.0
        %488 = vmatpush1.msra.mxu0 %v461
        %489 = vmatprep.subr.mxu0 0.0
        %490 = vmatpush1.msra.mxu0 %v462
        %491 = vmatprep.subr.mxu0 0.0
        %492 = vmatpush1.msra.mxu0 %v463
        %493 = vmatprep.subr.mxu0 0.0
        %494 = vmatpush1.msra.mxu0 %v464
        %495 = vmatprep.subr.mxu0 0.0
        %496 = vmatpush1.msra.mxu0 %v465
        %497 = vmatprep.subr.mxu0 0.0
        %498 = vmatpush1.msra.mxu0 %v466
        %499 = vmatprep.subr.mxu0 0.0
        %500 = vmatpush1.msra.mxu0 %v467
        %501 = vmatprep.subr.mxu0 0.0
        %502 = vmatpush1.msra.mxu0 %v468
        %503 = vmatprep.subr.mxu0 0.0
        %504 = vmatpush1.msra.mxu0 %v469
        %505 = vmatprep.subr.mxu0 0.0
        %506 = vmatpush1.msra.mxu0 %v470
        %507 = vmatprep.subr.mxu0 0.0
        %508 = vmatpush1.msra.mxu0 %v471
        %509 = vmatprep.subr.mxu0 0.0
        %510 = vmatpush1.msra.mxu0 %v472
        %511 = vmatprep.subr.mxu0 0.0
        %512 = vmatpush1.msra.mxu0 %v473
        %513 = vmatprep.subr.mxu0 0.0
        %514 = vmatpush1.msra.mxu0 0.0
        %515 = vmatprep.subr.mxu0 0.0
        %516 = vmatpush1.msra.mxu0 0.0
        %517 = vmatprep.subr.mxu0 0.0
        %518 = vmatpush1.msra.mxu0 0.0
        %519 = vmatprep.subr.mxu0 0.0
        %520 = vmatpush1.msra.mxu0 0.0
        %521 = vmatprep.subr.mxu0 0.0
        %522 = vmatpush1.msra.mxu0 0.0
        %523 = vmatprep.subr.mxu0 0.0
        %524 = vmatpush1.msra.mxu0 0.0
        %525 = vmatprep.subr.mxu0 0.0
        %526 = vmatpush1.msra.mxu0 0.0
        %527 = vmatprep.subr.mxu0 0.0
        %528 = vmatpush1.msra.mxu0 0.0
        %529 = vmatprep.subr.mxu0 0.0
        %530 = vmatpush1.msra.mxu0 0.0
        %531 = vmatprep.subr.mxu0 0.0
        %532 = vmatpush1.msra.mxu0 0.0
        %533 = vmatprep.subr.mxu0 0.0
        %534 = vmatpush1.msra.mxu0 0.0
        %535 = vmatprep.subr.mxu0 0.0
        %536 = vmatpush1.msra.mxu0 0.0
        %537 = vmatprep.subr.mxu0 0.0
        %538 = vmatpush1.msra.mxu0 0.0
        %539 = vmatprep.subr.mxu0 0.0
        %540 = vmatpush1.msra.mxu0 0.0
        %541 = vmatprep.subr.mxu0 0.0
        %542 = vmatpush1.msra.mxu0 0.0
        %543 = vmatprep.subr.mxu0 0.0
        %544 = vmatpush1.msra.mxu0 0.0
        %545 = vmatprep.mubr.f32.mxu0 0.0
        %546 = vmatmul.mubr.f32.gmra.mrb[0].mxu0 %v456
        %v547 = vpop.f32.mrb[0].mxu0
        %v548 = vadd.f32 %v479, %v547
        %v549 = vpop.f32.mrb[0].mxu0
        %550 = vmatprep.mubr.f32.mxu0 0.0
        %551 = vmatmul.mubr.f32.gmra.mrb[0].mxu0 %v457
        %v552 = vpop.f32.mrb[0].mxu0
        %v553 = vadd.f32 %v479, %v552
        %v554 = vpop.f32.mrb[0].mxu0
        %555 = vdwg.mxu0
        %556 = vst [vmem:[%s350] sm:$0xff] %v548
        %557 = vst [vmem:[%s350 + $0x8] sm:$0xff] %v553
        %s558 = sand.u32 %s187, 1
        %s559 = scalar_lea.sflag [#allocation4], %s558
        %s560 = sand.u32 %s187, 1
        %s561 = smul.addr %s560, 16
        %s562 = scalar_lea.vmem [#allocation10], %s561
        // Predicated region
        $region61: #{tpu_custom_call.1} parent=43 // pred_check
          %p563 = pneg %p197
        $region62: #{tpu_custom_call.1} parent=43 // pred_check_branch
          %565 = sbr.rel (%p563) target = $region64
        $region63: #{tpu_custom_call.1} parent=43 // pred_region
          %s566 = smul.u32 2, %s32
          %s568 = ssub.s32 256, 256
          %569 = vsyncadd %s559, %s568
          %s570 = smul.addr %s566, 6
          %s571 = sadd.s32 %s31, %s570
          %s572 = smul.addr %s571, 128
          %s573 = scalar_lea.hbm %s6, %s572
          %s574 = sshll.u32 %s562, 4
          %s575 = int_to_ptr.vmem [resolvable:$true] %s574
          %580 = dma.vmem_to_hbm [thread:$0]  %s575, 256, %s573, %s559, 128, 768, 8
        $region64: #{tpu_custom_call.1} parent=43 // pred_fallthru
          _
      $region44: #{tpu_custom_call.1} parent=5 // pred_fallthru
        _
      %p581 = scmp.le.s32.totalorder 2, %s22
      // Predicated region
      $region65: #{tpu_custom_call.1} parent=5 // pred_check
        %p582 = pneg %p581
      $region66: #{tpu_custom_call.1} parent=5 // pred_check_branch
        %584 = sbr.rel (%p582) target = $region68
      $region67: #{tpu_custom_call.1} parent=5 // pred_region
        %s585 = ssub.s32 %s22, 2
        // Predicated region
        $region69: #{tpu_custom_call.1} parent=67 // pred_check
          %p586 = pneg %p203
        $region70: #{tpu_custom_call.1} parent=67 // pred_check_branch
          %588 = sbr.rel (%p586) target = $region72
        $region71: #{tpu_custom_call.1} parent=67 // pred_region
          %s589 = sand.u32 %s188, 1
          %s590 = scalar_lea.sflag [#allocation4], %s589
          %s591 = sand.u32 %s188, 1
          %s592 = smul.addr %s591, 16
          %s593 = scalar_lea.vmem [#allocation10], %s592
          %594 = dma.done %s590, 256
        $region72: #{tpu_custom_call.1} parent=67 // pred_fallthru
          _
      $region68: #{tpu_custom_call.1} parent=5 // pred_fallthru
        _
    $region6: #{tpu_custom_call.1} parent=1 // loop_footer
      %s26 = sadd.s32 1, %s22
    $region7: #{tpu_custom_call.1} parent=1 // loop_footer_branch
      %21 = sbr.rel target = $region3
    $region8: #{tpu_custom_call.1} parent=1 // loop_exit
      _
    %595 = vsyncpa [#allocation3], 1
    %s596 = scalar_lea.sflag [#allocation3], 1
    %597 = vsyncpa %s596, 1
    %598 = vsyncpa [#allocation6], 1
    %s599 = scalar_lea.sflag [#allocation6], 1
    %600 = vsyncpa %s599, 1
    %601 = vsyncpa [#allocation9], 1
    %602 = vsyncpa [#allocation4], 1
    %s603 = scalar_lea.sflag [#allocation4], 1
    %604 = vsyncpa %s603, 1

// kernel: tpu_custom_call.1
$region0: #{tpu_custom_call.1}
  #allocation0 [shape = 'u32[]', space=smem, size = 0x4, offset = 0x4, fixed_abs, tag = 'smem constant byte address 0x4 - core index']
  #allocation1 [shape = 'u32[144,128]{1,0:T(1,128)}', space=vmem, size = 0x12000, scoped, tag = 'internal scratch']
  %s0 = inlined_call_operand.hbm [shape: f32[6,1,128], index: 0, kind: input, shape index: {}]
  %s1 = inlined_call_operand.hbm [shape: f32[6,16,24], index: 1, kind: input, shape index: {}]
  %s2 = inlined_call_operand.hbm [shape: f32[24,128], index: 2, kind: input, shape index: {}]
  %s3 = inlined_call_operand.vmem [shape: f32[1,128], index: 3, kind: input, shape index: {}]
  %s4 = inlined_call_operand.hbm [shape: f32[128,128], index: 4, kind: input, shape index: {}]
  %s5 = inlined_call_operand.vmem [shape: f32[1,128], index: 5, kind: input, shape index: {}]
  %s6 = inlined_call_operand.hbm [shape: f32[16,768], index: 6, kind: output, shape index: {}]
  %s7 = sld [smem:[#allocation0]]
  $region73: #{tpu_custom_call.1} parent=0
    _
  %s9 = ssub.s32 1, %s7
  %s10 = scalar_select 0, %s9, %s7
  $region1: #{tpu_custom_call.1} parent=0
    #allocation2 [shape = 'u8[1024]{0}', space=vmem, size = 0x400, scoped, tag = 'input window, operand 0']
    #allocation3 [shape = 's32[2]{0}', space=sflag, size = 0x8, scoped, tag = 'scoped memory for tpu_custom_call.1']
    #allocation4 [shape = 's32[2]{0}', space=sflag, size = 0x8, scoped, tag = 'scoped memory for tpu_custom_call.1']
    #allocation5 [shape = 'u8[16384]{0}', space=vmem, size = 0x4000, scoped, tag = 'input window, operand 1']
    #allocation6 [shape = 's32[2]{0}', space=sflag, size = 0x8, scoped, tag = 'scoped memory for tpu_custom_call.1']
    #allocation7 [shape = 'u8[12288]{0}', space=vmem, size = 0x3000, scoped, tag = 'input window, operand 2, single buffered']
    #allocation8 [shape = 'u8[65536]{0}', space=vmem, size = 0x10000, scoped, tag = 'input window, operand 4, single buffered']
    #allocation9 [shape = 's32[1]{0}', space=sflag, size = 0x4, scoped, tag = 'scoped memory for tpu_custom_call.1']
    #allocation10 [shape = 'u8[16384]{0}', space=vmem, size = 0x4000, scoped, tag = 'output window, operand 0']
    %11 = vsyncpa [#allocation3], 0
    %s12 = scalar_lea.sflag [#allocation3], 1
    %13 = vsyncpa %s12, 0
    %14 = vsyncpa [#allocation6], 0
    %s15 = scalar_lea.sflag [#allocation6], 1
    %16 = vsyncpa %s15, 0
    %17 = vsyncpa [#allocation9], 0
    %18 = vsyncpa [#allocation4], 0
    %s19 = scalar_lea.sflag [#allocation4], 1
    %20 = vsyncpa %s19, 0
    loop: start=0, step=1, limit=8
    $region2: #{tpu_custom_call.1} parent=1 // loop_pre_header
      _
    $region3: #{tpu_custom_call.1} parent=1 // loop_header
      %s22 = sphi 0, %s26
      %p23 = scmp.ge.s32.totalorder %s22, 8
      %s29 = sphi 0, %s41
      %s30 = sphi 0, %s37
      %s31 = sphi 0, %s29
      %s32 = sphi 0, %s30
      %s33 = sphi 0, %s31
      %s34 = sphi 0, %s32
      %s44 = sphi 0, %s46
      %s47 = sphi 0, %s44
      %s48 = sphi 0, %s47
      %s64 = sphi 0, %s48
      %s72 = sphi 0, %s74
      %s75 = sphi 0, %s72
      %s76 = sphi 0, %s75
      %s92 = sphi 0, %s76
      %s96 = sphi 0, %s96
      %s98 = sphi 0, %s96
      %s99 = sphi 0, %s98
      %s113 = sphi 0, %s99
      %s117 = sphi 0, %s117
      %s119 = sphi 0, %s117
      %s120 = sphi 0, %s119
      %s134 = sphi 0, %s120
      %s138 = sphi 0, %s138
      %s140 = sphi 0, %s138
      %s141 = sphi 0, %s140
      %s155 = sphi 0, %s141
      %s159 = sphi 0, %s159
      %s161 = sphi 0, %s159
      %s162 = sphi 0, %s161
      %s176 = sphi 0, %s162
      %s184 = sphi 0, %s186
      %s187 = sphi 0, %s184
      %s188 = sphi 0, %s187
      %s204 = sphi 0, %s188
    $region4: #{tpu_custom_call.1} parent=1 // loop_header_branch
      %25 = sbr.rel (%p23) target = $region8
    $region5: #{tpu_custom_call.1} parent=1 // loop_body
      %s27 = ssub.s32 %s22, 1
      %s28 = ssub.s32 %s22, 2
      %s35 = sadd.s32 1, %s30
      %p36 = scmp.ge.s32.totalorder %s35, 1
      %s37 = scalar_select %p36, 0, %s35
      %s38 = sadd.s32 1, %s29
      %s39 = scalar_select %p36, %s38, %s29
      %p40 = scmp.ge.s32.totalorder %s39, 6
      %s41 = scalar_select %p40, 0, %s39
      %s42 = ssub.s32 %s29, %s41
      %p43 = scmp.eq.s32.totalorder %s42, 0
      %s45 = sadd.s32 %s44, 1
      %s46 = scalar_select %p43, %s44, %s45
      %p49 = pneg %p43
      %p50 = scmp.eq.s32.totalorder %s22, 5
      %p51 = por %p49, %p50
      %p52 = scmp.ne.s32.totalorder %s44, %s47
      %p53 = scmp.eq.s32.totalorder %s22, 0
      %p54 = por %p52, %p53
      %p55 = scmp.ne.s32.totalorder %s44, %s47
      %p56 = scmp.eq.s32.totalorder %s27, 5
      %p57 = por %p55, %p56
      %p58 = scmp.ne.s32.totalorder %s47, %s48
      %p59 = scmp.eq.s32.totalorder %s27, 0
      %p60 = por %p58, %p59
      %p61 = scmp.ne.s32.totalorder %s47, %s48
      %p62 = scmp.eq.s32.totalorder %s28, 5
      %p63 = por %p61, %p62
      %p65 = scmp.ne.s32.totalorder %s48, %s64
      %p66 = scmp.eq.s32.totalorder %s28, 0
      %p67 = por %p65, %p66
      %s68 = ssub.s32 %s29, %s41
      %s69 = ssub.s32 %s30, %s37
      %s70 = sor.u32 %s68, %s69
      %p71 = scmp.eq.s32.totalorder %s70, 0
      %s73 = sadd.s32 %s72, 1
      %s74 = scalar_select %p71, %s72, %s73
      %p77 = pneg %p71
      %p78 = scmp.eq.s32.totalorder %s22, 5
      %p79 = por %p77, %p78
      %p80 = scmp.ne.s32.totalorder %s72, %s75
      %p81 = scmp.eq.s32.totalorder %s22, 0
      %p82 = por %p80, %p81
      %p83 = scmp.ne.s32.totalorder %s72, %s75
      %p84 = scmp.eq.s32.totalorder %s27, 5
      %p85 = por %p83, %p84
      %p86 = scmp.ne.s32.totalorder %s75, %s76
      %p87 = scmp.eq.s32.totalorder %s27, 0
      %p88 = por %p86, %p87
      %p89 = scmp.ne.s32.totalorder %s75, %s76
      %p90 = scmp.eq.s32.totalorder %s28, 5
      %p91 = por %p89, %p90
      %p93 = scmp.ne.s32.totalorder %s76, %s92
      %p94 = scmp.eq.s32.totalorder %s28, 0
      %p95 = por %p93, %p94
      %s97 = sadd.s32 %s96, 1
      %p100 = scmp.eq.s32.totalorder %s22, 5
      %p101 = scmp.ne.s32.totalorder %s96, %s98
      %p102 = scmp.eq.s32.totalorder %s22, 0
      %p103 = por %p101, %p102
      %p104 = scmp.ne.s32.totalorder %s96, %s98
      %p105 = scmp.eq.s32.totalorder %s27, 5
      %p106 = por %p104, %p105
      %p107 = scmp.ne.s32.totalorder %s98, %s99
      %p108 = scmp.eq.s32.totalorder %s27, 0
      %p109 = por %p107, %p108
      %p110 = scmp.ne.s32.totalorder %s98, %s99
      %p111 = scmp.eq.s32.totalorder %s28, 5
      %p112 = por %p110, %p111
      %p114 = scmp.ne.s32.totalorder %s99, %s113
      %p115 = scmp.eq.s32.totalorder %s28, 0
      %p116 = por %p114, %p115
      %s118 = sadd.s32 %s117, 1
      %p121 = scmp.eq.s32.totalorder %s22, 5
      %p122 = scmp.ne.s32.totalorder %s117, %s119
      %p123 = scmp.eq.s32.totalorder %s22, 0
      %p124 = por %p122, %p123
      %p125 = scmp.ne.s32.totalorder %s117, %s119
      %p126 = scmp.eq.s32.totalorder %s27, 5
      %p127 = por %p125, %p126
      %p128 = scmp.ne.s32.totalorder %s119, %s120
      %p129 = scmp.eq.s32.totalorder %s27, 0
      %p130 = por %p128, %p129
      %p131 = scmp.ne.s32.totalorder %s119, %s120
      %p132 = scmp.eq.s32.totalorder %s28, 5
      %p133 = por %p131, %p132
      %p135 = scmp.ne.s32.totalorder %s120, %s134
      %p136 = scmp.eq.s32.totalorder %s28, 0
      %p137 = por %p135, %p136
      %s139 = sadd.s32 %s138, 1
      %p142 = scmp.eq.s32.totalorder %s22, 5
      %p143 = scmp.ne.s32.totalorder %s138, %s140
      %p144 = scmp.eq.s32.totalorder %s22, 0
      %p145 = por %p143, %p144
      %p146 = scmp.ne.s32.totalorder %s138, %s140
      %p147 = scmp.eq.s32.totalorder %s27, 5
      %p148 = por %p146, %p147
      %p149 = scmp.ne.s32.totalorder %s140, %s141
      %p150 = scmp.eq.s32.totalorder %s27, 0
      %p151 = por %p149, %p150
      %p152 = scmp.ne.s32.totalorder %s140, %s141
      %p153 = scmp.eq.s32.totalorder %s28, 5
      %p154 = por %p152, %p153
      %p156 = scmp.ne.s32.totalorder %s141, %s155
      %p157 = scmp.eq.s32.totalorder %s28, 0
      %p158 = por %p156, %p157
      %s160 = sadd.s32 %s159, 1
      %p163 = scmp.eq.s32.totalorder %s22, 5
      %p164 = scmp.ne.s32.totalorder %s159, %s161
      %p165 = scmp.eq.s32.totalorder %s22, 0
      %p166 = por %p164, %p165
      %p167 = scmp.ne.s32.totalorder %s159, %s161
      %p168 = scmp.eq.s32.totalorder %s27, 5
      %p169 = por %p167, %p168
      %p170 = scmp.ne.s32.totalorder %s161, %s162
      %p171 = scmp.eq.s32.totalorder %s27, 0
      %p172 = por %p170, %p171
      %p173 = scmp.ne.s32.totalorder %s161, %s162
      %p174 = scmp.eq.s32.totalorder %s28, 5
      %p175 = por %p173, %p174
      %p177 = scmp.ne.s32.totalorder %s162, %s176
      %p178 = scmp.eq.s32.totalorder %s28, 0
      %p179 = por %p177, %p178
      %s180 = ssub.s32 %s30, %s37
      %s181 = ssub.s32 %s29, %s41
      %s182 = sor.u32 %s180, %s181
      %p183 = scmp.eq.s32.totalorder %s182, 0
      %s185 = sadd.s32 %s184, 1
      %s186 = scalar_select %p183, %s184, %s185
      %p189 = pneg %p183
      %p190 = scmp.eq.s32.totalorder %s22, 5
      %p191 = por %p189, %p190
      %p192 = scmp.ne.s32.totalorder %s184, %s187
      %p193 = scmp.eq.s32.totalorder %s22, 0
      %p194 = por %p192, %p193
      %p195 = scmp.ne.s32.totalorder %s184, %s187
      %p196 = scmp.eq.s32.totalorder %s27, 5
      %p197 = por %p195, %p196
      %p198 = scmp.ne.s32.totalorder %s187, %s188
      %p199 = scmp.eq.s32.totalorder %s27, 0
      %p200 = por %p198, %p199
      %p201 = scmp.ne.s32.totalorder %s187, %s188
      %p202 = scmp.eq.s32.totalorder %s28, 5
      %p203 = por %p201, %p202
      %p205 = scmp.ne.s32.totalorder %s188, %s204
      %p206 = scmp.eq.s32.totalorder %s28, 0
      %p207 = por %p205, %p206
      %p208 = scmp.le.s32.totalorder 1, %s22
      %p209 = scmp.lt.s32.totalorder %s22, 7
      %p210 = pnand %p208, %p209
      %p211 = pneg %p210
      // Predicated region
      $region9: #{tpu_custom_call.1} parent=5 // pred_check
        _
      $region10: #{tpu_custom_call.1} parent=5 // pred_check_branch
        %213 = sbr.rel (%p210) target = $region12
      $region11: #{tpu_custom_call.1} parent=5 // pred_region
        %s214 = ssub.s32 %s22, 1
        // Predicated region
        $region13: #{tpu_custom_call.1} parent=11 // pred_check
          %p215 = pneg %p109
        $region14: #{tpu_custom_call.1} parent=11 // pred_check_branch
          %217 = sbr.rel (%p215) target = $region16
        $region15: #{tpu_custom_call.1} parent=11 // pred_region
          %s219 = ssub.s32 384, 384
          %220 = vsyncadd [#allocation6], %s219
          %s221 = sshll.u32 [#allocation7], 4
          %s222 = int_to_ptr.vmem [resolvable:$true] %s221
          %227 = dma.hbm_to_vmem [thread:$0]  %s2, 384, %s222, [#allocation6], 128, 128, 8
        $region16: #{tpu_custom_call.1} parent=11 // pred_fallthru
          _
        // Predicated region
        $region17: #{tpu_custom_call.1} parent=11 // pred_check
          %p228 = pneg %p130
        $region18: #{tpu_custom_call.1} parent=11 // pred_check_branch
          %230 = sbr.rel (%p228) target = $region20
        $region19: #{tpu_custom_call.1} parent=11 // pred_region
          _
        $region20: #{tpu_custom_call.1} parent=11 // pred_fallthru
          _
        // Predicated region
        $region21: #{tpu_custom_call.1} parent=11 // pred_check
          %p231 = pneg %p151
        $region22: #{tpu_custom_call.1} parent=11 // pred_check_branch
          %233 = sbr.rel (%p231) target = $region24
        $region23: #{tpu_custom_call.1} parent=11 // pred_region
          %s235 = ssub.s32 2048, 2048
          %236 = vsyncadd [#allocation9], %s235
          %s237 = sshll.u32 [#allocation8], 4
          %s238 = int_to_ptr.vmem [resolvable:$true] %s237
          %243 = dma.hbm_to_vmem [thread:$0]  %s4, 2048, %s238, [#allocation9], 128, 128, 8
        $region24: #{tpu_custom_call.1} parent=11 // pred_fallthru
          _
        // Predicated region
        $region25: #{tpu_custom_call.1} parent=11 // pred_check
          %p244 = pneg %p172
        $region26: #{tpu_custom_call.1} parent=11 // pred_check_branch
          %246 = sbr.rel (%p244) target = $region28
        $region27: #{tpu_custom_call.1} parent=11 // pred_region
          _
        $region28: #{tpu_custom_call.1} parent=11 // pred_fallthru
          _
      $region12: #{tpu_custom_call.1} parent=5 // pred_fallthru
        _
      %p247 = scmp.lt.s32.totalorder %s22, 6
      // Predicated region
      $region29: #{tpu_custom_call.1} parent=5 // pred_check
        %p248 = pneg %p247
      $region30: #{tpu_custom_call.1} parent=5 // pred_check_branch
        %250 = sbr.rel (%p248) target = $region32
      $region31: #{tpu_custom_call.1} parent=5 // pred_region
        // Predicated region
        $region33: #{tpu_custom_call.1} parent=31 // pred_check
          %p251 = pneg %p54
        $region34: #{tpu_custom_call.1} parent=31 // pred_check_branch
          %253 = sbr.rel (%p251) target = $region36
        $region35: #{tpu_custom_call.1} parent=31 // pred_region
          %s254 = sand.u32 %s44, 1
          %s255 = scalar_lea.sflag [#allocation3], %s254
          %s256 = sand.u32 %s44, 1
          %s257 = scalar_lea.vmem [#allocation2], %s256
          %s259 = ssub.s32 16, 16
          %260 = vsyncadd %s255, %s259
          %s261 = smul.addr %s29, 16
          %s262 = scalar_lea.hbm %s0, %s261
          %s264 = sshll.u32 %s257, 4
          %s265 = int_to_ptr.vmem [resolvable:$true] %s264
          %267 = dma.hbm_to_vmem [thread:$0]  %s262, 16, %s265, %s255
        $region36: #{tpu_custom_call.1} parent=31 // pred_fallthru
          _
        // Predicated region
        $region37: #{tpu_custom_call.1} parent=31 // pred_check
          %p268 = pneg %p82
        $region38: #{tpu_custom_call.1} parent=31 // pred_check_branch
          %270 = sbr.rel (%p268) target = $region40
        $region39: #{tpu_custom_call.1} parent=31 // pred_region
          %s271 = sand.u32 %s22, 1
          %s272 = scalar_lea.sflag [#allocation6], %s271
          %s273 = sand.u32 %s72, 1
          %s274 = smul.addr %s273, 16
          %s275 = scalar_lea.vmem [#allocation5], %s274
          %s276 = smul.u32 2, %s30
          %s278 = ssub.s32 256, 256
          %279 = vsyncadd %s272, %s278
          %s280 = smul.addr %s29, 2
          %s281 = sadd.s32 %s276, %s280
          %s282 = smul.addr %s281, 128
          %s283 = scalar_lea.hbm %s1, %s282
          %s284 = sshll.u32 %s275, 4
          %s285 = int_to_ptr.vmem [resolvable:$true] %s284
          %290 = dma.hbm_to_vmem [thread:$0]  %s283, 256, %s285, %s272, 128, 128, 8
        $region40: #{tpu_custom_call.1} parent=31 // pred_fallthru
          _
      $region32: #{tpu_custom_call.1} parent=5 // pred_fallthru
        _
      %p291 = scmp.le.s32.totalorder 1, %s22
      %p292 = scmp.lt.s32.totalorder %s22, 7
      %p293 = pnand %p291, %p292
      %p294 = pneg %p293
      // Predicated region
      $region41: #{tpu_custom_call.1} parent=5 // pred_check
        _
      $region42: #{tpu_custom_call.1} parent=5 // pred_check_branch
        %296 = sbr.rel (%p293) target = $region44
      $region43: #{tpu_custom_call.1} parent=5 // pred_region
        %s297 = ssub.s32 %s22, 1
        %s298 = sand.u32 %s47, 1
        %s299 = scalar_lea.sflag [#allocation3], %s298
        %s300 = sand.u32 %s47, 1
        %s301 = scalar_lea.vmem [#allocation2], %s300
        // Predicated region
        $region45: #{tpu_custom_call.1} parent=43 // pred_check
          %p302 = pneg %p60
        $region46: #{tpu_custom_call.1} parent=43 // pred_check_branch
          %304 = sbr.rel (%p302) target = $region48
        $region47: #{tpu_custom_call.1} parent=43 // pred_region
          %305 = dma.done %s299, 16
        $region48: #{tpu_custom_call.1} parent=43 // pred_fallthru
          _
        %s306 = sand.u32 %s27, 1
        %s307 = scalar_lea.sflag [#allocation6], %s306
        %s308 = sand.u32 %s75, 1
        %s309 = smul.addr %s308, 16
        %s310 = scalar_lea.vmem [#allocation5], %s309
        // Predicated region
        $region49: #{tpu_custom_call.1} parent=43 // pred_check
          %p311 = pneg %p88
        $region50: #{tpu_custom_call.1} parent=43 // pred_check_branch
          %313 = sbr.rel (%p311) target = $region52
        $region51: #{tpu_custom_call.1} parent=43 // pred_region
          %314 = dma.done %s307, 256
        $region52: #{tpu_custom_call.1} parent=43 // pred_fallthru
          _
        // Predicated region
        $region53: #{tpu_custom_call.1} parent=43 // pred_check
          %p315 = pneg %p109
        $region54: #{tpu_custom_call.1} parent=43 // pred_check_branch
          %317 = sbr.rel (%p315) target = $region56
        $region55: #{tpu_custom_call.1} parent=43 // pred_region
          %318 = dma.done [#allocation6], 384
        $region56: #{tpu_custom_call.1} parent=43 // pred_fallthru
          _
        // Predicated region
        $region57: #{tpu_custom_call.1} parent=43 // pred_check
          %p319 = pneg %p151
        $region58: #{tpu_custom_call.1} parent=43 // pred_check_branch
          %321 = sbr.rel (%p319) target = $region60
        $region59: #{tpu_custom_call.1} parent=43 // pred_region
          %322 = dma.done [#allocation9], 2048
        $region60: #{tpu_custom_call.1} parent=43 // pred_fallthru
          _
        %s323 = sand.u32 %s47, 1
        %s324 = scalar_lea.sflag [#allocation3], %s323
        %s325 = sand.u32 %s47, 1
        %s326 = scalar_lea.vmem [#allocation2], %s325
        %p327 = pneg %p60
        %p328 = pneg %p57
        %s329 = sand.u32 %s27, 1
        %s330 = scalar_lea.sflag [#allocation6], %s329
        %s331 = sand.u32 %s75, 1
        %s332 = smul.addr %s331, 16
        %s333 = scalar_lea.vmem [#allocation5], %s332
        %p334 = pneg %p88
        %p335 = pneg %p85
        %p336 = pneg %p109
        %p337 = pneg %p106
        %p338 = pneg %p130
        %p339 = pneg %p127
        %p340 = pneg %p151
        %p341 = pneg %p148
        %p342 = pneg %p172
        %p343 = pneg %p169
        %p344 = pneg %p200
        %p345 = pneg %p197
        %s346 = sand.u32 %s187, 1
        %s347 = scalar_lea.sflag [#allocation4], %s346
        %s348 = sand.u32 %s187, 1
        %s349 = smul.addr %s348, 16
        %s350 = scalar_lea.vmem [#allocation10], %s349
        %s351 = smul.u32 2, %s32
        %s352 = smul.u32 2, %s32
        %v353 = vld [vmem:[%s310] sm:$0xff]
        %v354 = vld [vmem:[%s310 + $0x8] sm:$0xff]
        %v355 = vld [vmem:[#allocation7] sm:$0xff]
        %v356 = vld [vmem:[#allocation7 + $0x8] sm:$0xff]
        %v357 = vld [vmem:[#allocation7 + $0x10] sm:$0xff]
        %v358 = vld [vmem:[%s3] sm:$0x1]
        %v360 = vlaneseq
        %v361 = vshrl.u32 %v360, 7
        %v362 = vsub.s32 0, %v361
        %v363 = vrot.slane %v358, %v362
        %vm365 = vcmask 195584
        %v367 = vsel %vm365, %v353, 0
        %v370 = vsel %vm365, %v354, 0
        %372 = vmatprep.subr.mxu0 0.0
        %373 = vmatpush1.msra.mxu0 %v355
        %374 = vmatprep.subr.mxu0 0.0
        %375 = vmatpush1.msra.mxu0 %v356
        %376 = vmatprep.subr.mxu0 0.0
        %377 = vmatpush1.msra.mxu0 %v357
        %378 = vmatprep.subr.mxu0 0.0
        %379 = vmatpush1.msra.mxu0 0.0
        %380 = vmatprep.subr.mxu0 0.0
        %381 = vmatpush1.msra.mxu0 0.0
        %382 = vmatprep.subr.mxu0 0.0
        %383 = vmatpush1.msra.mxu0 0.0
        %384 = vmatprep.subr.mxu0 0.0
        %385 = vmatpush1.msra.mxu0 0.0
        %386 = vmatprep.subr.mxu0 0.0
        %387 = vmatpush1.msra.mxu0 0.0
        %388 = vmatprep.subr.mxu0 0.0
        %389 = vmatpush1.msra.mxu0 0.0
        %390 = vmatprep.subr.mxu0 0.0
        %391 = vmatpush1.msra.mxu0 0.0
        %392 = vmatprep.subr.mxu0 0.0
        %393 = vmatpush1.msra.mxu0 0.0
        %394 = vmatprep.subr.mxu0 0.0
        %395 = vmatpush1.msra.mxu0 0.0
        %396 = vmatprep.subr.mxu0 0.0
        %397 = vmatpush1.msra.mxu0 0.0
        %398 = vmatprep.subr.mxu0 0.0
        %399 = vmatpush1.msra.mxu0 0.0
        %400 = vmatprep.subr.mxu0 0.0
        %401 = vmatpush1.msra.mxu0 0.0
        %402 = vmatprep.subr.mxu0 0.0
        %403 = vmatpush1.msra.mxu0 0.0
        %404 = vmatprep.subr.mxu0 0.0
        %405 = vmatpush1.msra.mxu0 0.0
        %406 = vmatprep.subr.mxu0 0.0
        %407 = vmatpush1.msra.mxu0 0.0
        %408 = vmatprep.subr.mxu0 0.0
        %409 = vmatpush1.msra.mxu0 0.0
        %410 = vmatprep.subr.mxu0 0.0
        %411 = vmatpush1.msra.mxu0 0.0
        %412 = vmatprep.subr.mxu0 0.0
        %413 = vmatpush1.msra.mxu0 0.0
        %414 = vmatprep.subr.mxu0 0.0
        %415 = vmatpush1.msra.mxu0 0.0
        %416 = vmatprep.subr.mxu0 0.0
        %417 = vmatpush1.msra.mxu0 0.0
        %418 = vmatprep.subr.mxu0 0.0
        %419 = vmatpush1.msra.mxu0 0.0
        %420 = vmatprep.subr.mxu0 0.0
        %421 = vmatpush1.msra.mxu0 0.0
        %422 = vmatprep.subr.mxu0 0.0
        %423 = vmatpush1.msra.mxu0 0.0
        %424 = vmatprep.subr.mxu0 0.0
        %425 = vmatpush1.msra.mxu0 0.0
        %426 = vmatprep.subr.mxu0 0.0
        %427 = vmatpush1.msra.mxu0 0.0
        %428 = vmatprep.subr.mxu0 0.0
        %429 = vmatpush1.msra.mxu0 0.0
        %430 = vmatprep.subr.mxu0 0.0
        %431 = vmatpush1.msra.mxu0 0.0
        %432 = vmatprep.subr.mxu0 0.0
        %433 = vmatpush1.msra.mxu0 0.0
        %434 = vmatprep.subr.mxu0 0.0
        %435 = vmatpush1.msra.mxu0 0.0
        %436 = vmatprep.mubr.f32.mxu0 0.0
        %437 = vmatmul.mubr.f32.gmra.mrb[0].mxu0 %v367
        %v438 = vpop.f32.mrb[0].mxu0
        %v439 = vadd.f32 %v363, %v438
        %v440 = vpop.f32.mrb[0].mxu0
        %441 = vmatprep.mubr.f32.mxu0 0.0
        %442 = vmatmul.mubr.f32.gmra.mrb[0].mxu0 %v370
        %v443 = vpop.f32.mrb[0].mxu0
        %v444 = vadd.f32 %v363, %v443
        %v445 = vpop.f32.mrb[0].mxu0
        %446 = vdwg.mxu0
        %v447 = vld [vmem:[%s301] sm:$0x1]
        %v449 = vlaneseq
        %v450 = vshrl.u32 %v449, 7
        %v451 = vsub.s32 0, %v450
        %v452 = vrot.slane %v447, %v451
        %v454 = vmul.f32 %v452, %v439
        %v455 = vmul.f32 %v452, %v444
        %v456 = vmax.f32 %v454, 0.0
        %v457 = vmax.f32 %v455, 0.0
        %v458 = vld [vmem:[#allocation8] sm:$0xff]
        %v459 = vld [vmem:[#allocation8 + $0x8] sm:$0xff]
        %v460 = vld [vmem:[#allocation8 + $0x10] sm:$0xff]
        %v461 = vld [vmem:[#allocation8 + $0x18] sm:$0xff]
        %v462 = vld [vmem:[#allocation8 + $0x20] sm:$0xff]
        %v463 = vld [vmem:[#allocation8 + $0x28] sm:$0xff]
        %v464 = vld [vmem:[#allocation8 + $0x30] sm:$0xff]
        %v465 = vld [vmem:[#allocation8 + $0x38] sm:$0xff]
        %v466 = vld [vmem:[#allocation8 + $0x40] sm:$0xff]
        %v467 = vld [vmem:[#allocation8 + $0x48] sm:$0xff]
        %v468 = vld [vmem:[#allocation8 + $0x50] sm:$0xff]
        %v469 = vld [vmem:[#allocation8 + $0x58] sm:$0xff]
        %v470 = vld [vmem:[#allocation8 + $0x60] sm:$0xff]
        %v471 = vld [vmem:[#allocation8 + $0x68] sm:$0xff]
        %v472 = vld [vmem:[#allocation8 + $0x70] sm:$0xff]
        %v473 = vld [vmem:[#allocation8 + $0x78] sm:$0xff]
        %v474 = vld [vmem:[%s5] sm:$0x1]
        %v476 = vlaneseq
        %v477 = vshrl.u32 %v476, 7
        %v478 = vsub.s32 0, %v477
        %v479 = vrot.slane %v474, %v478
        %481 = vmatprep.subr.mxu0 0.0
        %482 = vmatpush1.msra.mxu0 %v458
        %483 = vmatprep.subr.mxu0 0.0
        %484 = vmatpush1.msra.mxu0 %v459
        %485 = vmatprep.subr.mxu0 0.0
        %486 = vmatpush1.msra.mxu0 %v460
        %487 = vmatprep.subr.mxu0 0.0
        %488 = vmatpush1.msra.mxu0 %v461
        %489 = vmatprep.subr.mxu0 0.0
        %490 = vmatpush1.msra.mxu0 %v462
        %491 = vmatprep.subr.mxu0 0.0
        %492 = vmatpush1.msra.mxu0 %v463
        %493 = vmatprep.subr.mxu0 0.0
        %494 = vmatpush1.msra.mxu0 %v464
        %495 = vmatprep.subr.mxu0 0.0
        %496 = vmatpush1.msra.mxu0 %v465
        %497 = vmatprep.subr.mxu0 0.0
        %498 = vmatpush1.msra.mxu0 %v466
        %499 = vmatprep.subr.mxu0 0.0
        %500 = vmatpush1.msra.mxu0 %v467
        %501 = vmatprep.subr.mxu0 0.0
        %502 = vmatpush1.msra.mxu0 %v468
        %503 = vmatprep.subr.mxu0 0.0
        %504 = vmatpush1.msra.mxu0 %v469
        %505 = vmatprep.subr.mxu0 0.0
        %506 = vmatpush1.msra.mxu0 %v470
        %507 = vmatprep.subr.mxu0 0.0
        %508 = vmatpush1.msra.mxu0 %v471
        %509 = vmatprep.subr.mxu0 0.0
        %510 = vmatpush1.msra.mxu0 %v472
        %511 = vmatprep.subr.mxu0 0.0
        %512 = vmatpush1.msra.mxu0 %v473
        %513 = vmatprep.subr.mxu0 0.0
        %514 = vmatpush1.msra.mxu0 0.0
        %515 = vmatprep.subr.mxu0 0.0
        %516 = vmatpush1.msra.mxu0 0.0
        %517 = vmatprep.subr.mxu0 0.0
        %518 = vmatpush1.msra.mxu0 0.0
        %519 = vmatprep.subr.mxu0 0.0
        %520 = vmatpush1.msra.mxu0 0.0
        %521 = vmatprep.subr.mxu0 0.0
        %522 = vmatpush1.msra.mxu0 0.0
        %523 = vmatprep.subr.mxu0 0.0
        %524 = vmatpush1.msra.mxu0 0.0
        %525 = vmatprep.subr.mxu0 0.0
        %526 = vmatpush1.msra.mxu0 0.0
        %527 = vmatprep.subr.mxu0 0.0
        %528 = vmatpush1.msra.mxu0 0.0
        %529 = vmatprep.subr.mxu0 0.0
        %530 = vmatpush1.msra.mxu0 0.0
        %531 = vmatprep.subr.mxu0 0.0
        %532 = vmatpush1.msra.mxu0 0.0
        %533 = vmatprep.subr.mxu0 0.0
        %534 = vmatpush1.msra.mxu0 0.0
        %535 = vmatprep.subr.mxu0 0.0
        %536 = vmatpush1.msra.mxu0 0.0
        %537 = vmatprep.subr.mxu0 0.0
        %538 = vmatpush1.msra.mxu0 0.0
        %539 = vmatprep.subr.mxu0 0.0
        %540 = vmatpush1.msra.mxu0 0.0
        %541 = vmatprep.subr.mxu0 0.0
        %542 = vmatpush1.msra.mxu0 0.0
        %543 = vmatprep.subr.mxu0 0.0
        %544 = vmatpush1.msra.mxu0 0.0
        %545 = vmatprep.mubr.f32.mxu0 0.0
        %546 = vmatmul.mubr.f32.gmra.mrb[0].mxu0 %v456
        %v547 = vpop.f32.mrb[0].mxu0
        %v548 = vadd.f32 %v479, %v547
        %v549 = vpop.f32.mrb[0].mxu0
        %550 = vmatprep.mubr.f32.mxu0 0.0
        %551 = vmatmul.mubr.f32.gmra.mrb[0].mxu0 %v457
        %v552 = vpop.f32.mrb[0].mxu0
        %v553 = vadd.f32 %v479, %v552
        %v554 = vpop.f32.mrb[0].mxu0
        %555 = vdwg.mxu0
        %556 = vst [vmem:[%s350] sm:$0xff] %v548
        %557 = vst [vmem:[%s350 + $0x8] sm:$0xff] %v553
        %s558 = sand.u32 %s187, 1
        %s559 = scalar_lea.sflag [#allocation4], %s558
        %s560 = sand.u32 %s187, 1
        %s561 = smul.addr %s560, 16
        %s562 = scalar_lea.vmem [#allocation10], %s561
        // Predicated region
        $region61: #{tpu_custom_call.1} parent=43 // pred_check
          %p563 = pneg %p197
        $region62: #{tpu_custom_call.1} parent=43 // pred_check_branch
          %565 = sbr.rel (%p563) target = $region64
        $region63: #{tpu_custom_call.1} parent=43 // pred_region
          %s566 = smul.u32 2, %s32
          %s568 = ssub.s32 256, 256
          %569 = vsyncadd %s559, %s568
          %s570 = smul.addr %s566, 6
          %s571 = sadd.s32 %s31, %s570
          %s572 = smul.addr %s571, 128
          %s573 = scalar_lea.hbm %s6, %s572
          %s574 = sshll.u32 %s562, 4
          %s575 = int_to_ptr.vmem [resolvable:$true] %s574
          %580 = dma.vmem_to_hbm [thread:$0]  %s575, 256, %s573, %s559, 128, 768, 8
        $region64: #{tpu_custom_call.1} parent=43 // pred_fallthru
          _
      $region44: #{tpu_custom_call.1} parent=5 // pred_fallthru
        _
      %p581 = scmp.le.s32.totalorder 2, %s22
      // Predicated region
      $region65: #{tpu_custom_call.1} parent=5 // pred_check
        %p582 = pneg %p581
      $region66: #{tpu_custom_call.1} parent=5 // pred_check_branch
        %584 = sbr.rel (%p582) target = $region68
      $region67: #{tpu_custom_call.1} parent=5 // pred_region
        %s585 = ssub.s32 %s22, 2
        // Predicated region
        $region69: #{tpu_custom_call.1} parent=67 // pred_check
          %p586 = pneg %p203
        $region70: #{tpu_custom_call.1} parent=67 // pred_check_branch
          %588 = sbr.rel (%p586) target = $region72
        $region71: #{tpu_custom_call.1} parent=67 // pred_region
          %s589 = sand.u32 %s188, 1
          %s590 = scalar_lea.sflag [#allocation4], %s589
          %s591 = sand.u32 %s188, 1
          %s592 = smul.addr %s591, 16
          %s593 = scalar_lea.vmem [#allocation10], %s592
          %594 = dma.done %s590, 256
        $region72: #{tpu_custom_call.1} parent=67 // pred_fallthru
          _
      $region68: #{tpu_custom_call.1} parent=5 // pred_fallthru
        _
    $region6: #{tpu_custom_call.1} parent=1 // loop_footer
      %s26 = sadd.s32 1, %s22
    $region7: #{tpu_custom_call.1} parent=1 // loop_footer_branch
      %21 = sbr.rel target = $region3
    $region8: #{tpu_custom_call.1} parent=1 // loop_exit
      _
    %595 = vsyncpa [#allocation3], 1
    %s596 = scalar_lea.sflag [#allocation3], 1
    %597 = vsyncpa %s596, 1
    %598 = vsyncpa [#allocation6], 1
    %s599 = scalar_lea.sflag [#allocation6], 1
    %600 = vsyncpa %s599, 1
    %601 = vsyncpa [#allocation9], 1
    %602 = vsyncpa [#allocation4], 1
    %s603 = scalar_lea.sflag [#allocation4], 1
    %604 = vsyncpa %s603, 1

</llo_original>
